<compile_context>
chip_gen: v7x
topology: tpu7x:2x2x1
jax: 0.10.0
libtpu: 0.0.40
codegen_flags: <defaults>
</compile_context>

<pallas_src>
import functools
import math

import jax
import jax.numpy as jnp
from jax.experimental import pallas as pl
from jax.experimental.pallas import tpu as pltpu


def _attention_readout_kernel(tokens_ref, ws_ref, wv_ref, seg_t_ref,
                              bsel_t_ref, wp_ref, bp_ref, out_ref, *, n_valid):
    # tokens_ref: (TB, N, D)                ws_ref:    (D, H)  bf16 (q/seg/scale folded)
    # wv_ref:     (D, C)  bf16              seg_t_ref: (H, C)  bf16 one-hot head membership
    # bsel_t_ref: (TB, TB*N) bf16 one-hot batch membership
    # wp_ref:     (C, OUT) bf16             bp_ref:    (1, OUT) f32
    # out_ref:    (TB, OUT) f32             n_valid:   real (unpadded) token count
    TB, N, D = tokens_ref.shape
    C = wv_ref.shape[1]
    H = ws_ref.shape[1]

    # Fold the batch block into the matmul M dimension; bf16 MXU operands.
    t = tokens_ref[...].astype(jnp.bfloat16).reshape(TB * N, D)

    # Value projection + attention scores (query / head one-hot / 1/sqrt(hd)
    # are pre-folded into ws).  bf16 operands, f32 accumulation.
    v = jnp.dot(t, wv_ref[...], preferred_element_type=jnp.float32)        # (TB*N, C)
    scores = jnp.dot(t, ws_ref[...], preferred_element_type=jnp.float32)   # (TB*N, H)

    # Numerically-stable softmax over tokens per (batch, head): VPU/XLU work
    # on the 3-D view (sublane reductions), no one-hot broadcast matmuls.
    s3 = scores.reshape(TB, N, H)
    if n_valid < N:  # static: token axis was padded -> mask pad rows to -inf
        tok = jax.lax.broadcasted_iota(jnp.int32, (TB, N, H), 1)
        s3 = jnp.where(tok < n_valid, s3, jnp.float32(-1e30))
    m = jnp.max(s3, axis=1)                                                 # (TB, H)
    p3 = jnp.exp(s3 - m[:, None, :])                                        # (TB, N, H)
    denom = jnp.sum(p3, axis=1)                                             # (TB, H)
    p3 = p3 * pl.reciprocal(denom, approx=True)[:, None, :]  # EUP; weights in [0,1]

    # Broadcast each head's weight across its channels (one-hot matmul, bf16)
    # and reduce the weighted values over tokens (one-hot selector, bf16 MXU).
    p = p3.reshape(TB * N, H).astype(jnp.bfloat16)
    w = jnp.dot(p, seg_t_ref[...], preferred_element_type=jnp.float32)      # (TB*N, C)
    attn = jnp.dot(bsel_t_ref[...], (w * v).astype(jnp.bfloat16),
                   preferred_element_type=jnp.float32)                      # (TB, C)

    # Output projection (bf16 operands, f32 accumulation) + bias.
    out_ref[...] = jnp.dot(attn.astype(jnp.bfloat16), wp_ref[...],
                           preferred_element_type=jnp.float32) + bp_ref[...]


def _vmem_capacity_bytes():
    try:
        cap = getattr(pltpu.get_tpu_info(), "vmem_capacity_bytes", None)
        if cap:
            return int(cap)
    except Exception:
        pass
    return 64 * 1024 * 1024  # conservative default (v7x per-TensorCore VMEM)


def _pick_block_b(batch, n_tokens_padded, dino_dim, c_dim, *, target_rows=2048):
    """Largest divisor of `batch` such that the folded block (token
    double-buffer + bf16 copy + live (rows, C) intermediates) fits a VMEM
    budget, keeps the matmul M dimension around `target_rows`, and leaves at
    least 2 grid steps so both v7x TensorCores get work."""
    budget = int(_vmem_capacity_bytes() * 0.6)  # headroom for resident weights
    # Bytes per folded batch element (rows = n_tokens_padded):
    #   tokens: 2 f32 pipeline buffers + 1 bf16 in-kernel copy  -> 10*D B/row
    #   intermediates: v / w / w*v in f32 + bf16 casts + scores -> ~14*C B/row
    per_batch = n_tokens_padded * (10 * dino_dim + 14 * c_dim)
    cap = max(1, budget // max(per_batch, 1))
    cap = min(cap, max(1, target_rows // n_tokens_padded))
    if batch >= 2:
        cap = min(cap, batch // 2)  # grid >= 2 for v7x megacore sharding
    best = 1
    for d in range(1, batch + 1):
        if batch % d == 0 and d <= cap:
            best = d
    return best


def attention_readout(tokens, query, wk_t, wv_t, wp_t, bp,
                      *, n_head, head_dim, block_b=None):
    """tokens: (B, N, D) f32 or bf16.  query: (H, head_dim).
    wk_t / wv_t: (D, C) pre-transposed nn.Linear weights (C = H*head_dim).
    wp_t: (C, OUT) pre-transposed proj weight.  bp: (OUT,) proj bias."""
    B, N, D = tokens.shape
    H, hd = n_head, head_dim
    C = H * hd
    OUT = wp_t.shape[1]
    scale = 1.0 / math.sqrt(hd)  # SDPA default scale: 1/sqrt(query last dim)

    # ---- constant parameter transforms (done once per model, not per call) --
    # One-hot head membership: seg[c, h] = 1 iff channel c belongs to head h.
    seg = (jnp.arange(C)[:, None] // hd == jnp.arange(H)[None, :]).astype(jnp.float32)
    # Fold query, head one-hot and softmax scale into the key weight so the
    # kernel's score computation is a single (TB*N, D) x (D, H) matmul.
    q_flat = query.reshape(1, C).astype(jnp.float32)
    w_score = ((wk_t.astype(jnp.float32) * q_flat) @ seg * scale).astype(jnp.bfloat16)
    wv_bf = wv_t.astype(jnp.bfloat16)
    wp_bf = wp_t.astype(jnp.bfloat16)
    seg_t = seg.T.astype(jnp.bfloat16)                                      # (H, C)
    bp2 = bp.reshape(1, OUT).astype(jnp.float32)

    # ---- token-axis padding so batch folding works for any N (DINO: 257) ----
    N_pad = ((N + 7) // 8) * 8
    if N_pad != N:
        tokens = jnp.pad(tokens, ((0, 0), (0, N_pad - N), (0, 0)))

    TB = block_b if block_b is not None else _pick_block_b(B, N_pad, D, C)
    assert B % TB == 0, "block_b must divide the batch size"

    # One-hot batch selector: bsel_t[b, r] = 1 iff flattened row r belongs to
    # batch element b of the block (token reduction of weighted values on MXU).
    bsel_t = (jnp.arange(TB)[:, None] == jnp.arange(TB * N_pad)[None, :] // N_pad)
    bsel_t = bsel_t.astype(jnp.bfloat16)                                    # (TB, TB*N_pad)

    # NOTE(v5e): keep D and C multiples of 128 at production scale so the
    # 4x128x128 MXU tiles are fully used (DINO D=384 already is).
    vmem_limit = min(int(_vmem_capacity_bytes() * 0.85), 110 * 1024 * 1024)
    kernel = functools.partial(_attention_readout_kernel, n_valid=N)

    def call(single_buffer_consts):
        # Grid-invariant operands are DMA'd once; single-buffering them halves
        # their resident VMEM footprint (matters under v7x's 64 MiB VMEM).
        pm = pl.Buffered(1) if single_buffer_consts else None

        def cspec(shape):
            idx = lambda b: (0,) * len(shape)
            if pm is None:
                return pl.BlockSpec(shape, idx)
            return pl.BlockSpec(shape, idx, pipeline_mode=pm)

        return pl.pallas_call(
            kernel,
            out_shape=jax.ShapeDtypeStruct((B // TB, TB, OUT), jnp.float32),
            grid=(B // TB,),
            in_specs=[
                pl.BlockSpec((TB, N_pad, D), lambda b: (b, 0, 0)),  # tokens
                cspec((D, H)),            # w_score (q / seg / scale folded, bf16)
                cspec((D, C)),            # Wv^T  (bf16)
                cspec((H, C)),            # seg^T (bf16)
                cspec((TB, TB * N_pad)),  # batch selector^T (bf16)
                cspec((C, OUT)),          # Wp^T  (bf16)
                cspec((1, OUT)),          # proj bias (f32)
            ],
            out_specs=pl.BlockSpec((None, TB, OUT), lambda b: (b, 0, 0)),
            compiler_params=pltpu.CompilerParams(
                dimension_semantics=("parallel",),
                vmem_limit_bytes=vmem_limit),
        )(tokens, w_score, wv_bf, seg_t, bsel_t, wp_bf, bp2)

    try:
        out = call(True)
    except Exception:
        # Fallback for JAX builds that reject pipeline_mode=pl.Buffered(1):
        # default double-buffering is functionally identical (just a larger
        # resident-constant VMEM footprint).
        out = call(False)
    return out.reshape(B, OUT)


def attention_readout_reference(tokens, query, wk_t, wv_t, wp_t, bp,
                                *, n_head, head_dim):
    """Pure-JAX f32 reference mirroring the PyTorch forward."""
    B, N, D = tokens.shape
    H, hd = n_head, head_dim
    k = (tokens @ wk_t).reshape(B, N, H, hd).transpose(0, 2, 1, 3)   # (B,H,N,hd)
    v = (tokens @ wv_t).reshape(B, N, H, hd).transpose(0, 2, 1, 3)   # (B,H,N,hd)
    q = jnp.broadcast_to(query[None, :, None, :], (B, H, 1, hd))     # (B,H,1,hd)
    s = jnp.einsum("bhqd,bhnd->bhqn", q, k) / math.sqrt(hd)          # (B,H,1,N)
    p = jax.nn.softmax(s, axis=-1)
    o = jnp.einsum("bhqn,bhnd->bhqd", p, v).reshape(B, H * hd)       # (B, C)
    return o @ wp_t + bp[None, :]


if __name__ == "__main__":
    def run_case(batch, n_tokens, dino_dim, n_head, head_dim, out_dim):
        c = n_head * head_dim
        key = jax.random.PRNGKey(0)
        k0, k1, k2, k3, k4, k5 = jax.random.split(key, 6)
        tokens = jax.random.normal(k0, (batch, n_tokens, dino_dim), jnp.float32)
        # deterministic "parameters" (shapes follow the module __init__)
        query = jax.random.normal(k1, (n_head, head_dim), jnp.float32)      # nn.Parameter
        wk = jax.random.normal(k2, (c, dino_dim), jnp.float32) * 0.05       # key.weight
        wv = jax.random.normal(k3, (c, dino_dim), jnp.float32) * 0.05       # value.weight
        wp = jax.random.normal(k4, (out_dim, c), jnp.float32) * 0.05        # proj.weight
        bp = jax.random.normal(k5, (out_dim,), jnp.float32) * 0.05          # proj.bias

        # kernel consumes pre-transposed (in, out) weights
        wk_t, wv_t, wp_t = wk.T, wv.T, wp.T

        out = attention_readout(tokens, query, wk_t, wv_t, wp_t, bp,
                                n_head=n_head, head_dim=head_dim)
        out = jax.block_until_ready(out)
        ref = attention_readout_reference(tokens, query, wk_t, wv_t, wp_t, bp,
                                          n_head=n_head, head_dim=head_dim)
        assert out.shape == (batch, out_dim)
        err = float(jnp.max(jnp.abs(out - ref)))
        # bf16 matmul operands (f32 accumulation) -> loosened tolerance vs f32 ref
        assert jnp.allclose(out, ref, atol=3e-2, rtol=3e-2), f"max abs err {err}"

    # 8-aligned token count: exercises batch folding (TB=2 per grid step).
    run_case(batch=4, n_tokens=16, dino_dim=128, n_head=4, head_dim=16, out_dim=32)
    # Non-8-aligned token count (real DINO has 257): exercises pad + -inf mask.
    run_case(batch=2, n_tokens=13, dino_dim=128, n_head=4, head_dim=16, out_dim=32)
    print("KERNEL_OK")
</pallas_src>

<mosaic_0001>
module attributes {stable_mosaic.version = 11 : i64} {
  func.func @_attention_readout_kernel(%arg0: i32, %arg1: memref<2x16x128xf32, #tpu.memory_space<vmem>>, %arg2: memref<128x4xbf16, #tpu.memory_space<vmem>>, %arg3: memref<128x64xbf16, #tpu.memory_space<vmem>>, %arg4: memref<4x64xbf16, #tpu.memory_space<vmem>>, %arg5: memref<2x32xbf16, #tpu.memory_space<vmem>>, %arg6: memref<64x32xbf16, #tpu.memory_space<vmem>>, %arg7: memref<1x32xf32, #tpu.memory_space<vmem>>, %arg8: memref<1x2x32xf32, #tpu.memory_space<vmem>>) attributes {dimension_semantics = [#tpu.dimension_semantics<parallel>], iteration_bounds = array<i64: 2>, scalar_prefetch = 0 : i64, scratch_operands = 0 : i64, tpu.core_type = #tpu.core_type<tc>, window_params = [{transform_indices = @transform_0, window_bounds = array<i64: 2, 16, 128>}, {pipeline_mode = #tpu.pipeline_mode<synchronous>, transform_indices = @transform_1, window_bounds = array<i64: 128, 4>}, {pipeline_mode = #tpu.pipeline_mode<synchronous>, transform_indices = @transform_2, window_bounds = array<i64: 128, 64>}, {pipeline_mode = #tpu.pipeline_mode<synchronous>, transform_indices = @transform_3, window_bounds = array<i64: 4, 64>}, {pipeline_mode = #tpu.pipeline_mode<synchronous>, transform_indices = @transform_4, window_bounds = array<i64: 2, 32>}, {pipeline_mode = #tpu.pipeline_mode<synchronous>, transform_indices = @transform_5, window_bounds = array<i64: 64, 32>}, {pipeline_mode = #tpu.pipeline_mode<synchronous>, transform_indices = @transform_6, window_bounds = array<i64: 1, 32>}, {transform_indices = @transform_7, window_bounds = array<i64: 1, 2, 32>}]} {
    %c0 = arith.constant 0 : index
    %c0_0 = arith.constant 0 : index
    %c0_1 = arith.constant 0 : index
    %0 = vector.load %arg1[%c0, %c0_0, %c0_1] : memref<2x16x128xf32, #tpu.memory_space<vmem>>, vector<2x16x128xf32>
    %1 = arith.truncf %0 : vector<2x16x128xf32> to vector<2x16x128xbf16>
    %2 = vector.shape_cast %1 : vector<2x16x128xbf16> to vector<32x128xbf16>
    %c0_2 = arith.constant 0 : index
    %c0_3 = arith.constant 0 : index
    %3 = vector.load %arg3[%c0_2, %c0_3] : memref<128x64xbf16, #tpu.memory_space<vmem>>, vector<128x64xbf16>
    %cst = arith.constant dense<0.000000e+00> : vector<32x64xf32>
    %4 = tpu.matmul %2, %3, %cst {dimension_numbers = #tpu.dot_dimension_numbers<[1], [0], [0], [1], [0, 0, 1, 1], [], []>} : vector<32x128xbf16>, vector<128x64xbf16>, vector<32x64xf32> -> vector<32x64xf32>
    %c0_4 = arith.constant 0 : index
    %c0_5 = arith.constant 0 : index
    %5 = vector.load %arg2[%c0_4, %c0_5] : memref<128x4xbf16, #tpu.memory_space<vmem>>, vector<128x4xbf16>
    %cst_6 = arith.constant dense<0.000000e+00> : vector<32x4xf32>
    %6 = tpu.matmul %2, %5, %cst_6 {dimension_numbers = #tpu.dot_dimension_numbers<[1], [0], [0], [1], [0, 0, 1, 1], [], []>} : vector<32x128xbf16>, vector<128x4xbf16>, vector<32x4xf32> -> vector<32x4xf32>
    %7 = vector.shape_cast %6 : vector<32x4xf32> to vector<2x16x4xf32>
    %cst_7 = arith.constant dense<0xFF800000> : vector<2x4xf32>
    %8 = vector.multi_reduction <maximumf>, %7, %cst_7 [1] : vector<2x16x4xf32> to vector<2x4xf32>
    %9 = vector.shape_cast %8 : vector<2x4xf32> to vector<2x1x4xf32>
    %10 = vector.broadcast %9 : vector<2x1x4xf32> to vector<2x16x4xf32>
    %11 = arith.subf %7, %10 : vector<2x16x4xf32>
    %12 = math.exp %11 : vector<2x16x4xf32>
    %cst_8 = arith.constant dense<0.000000e+00> : vector<2x4xf32>
    %13 = vector.multi_reduction <add>, %12, %cst_8 [1] : vector<2x16x4xf32> to vector<2x4xf32>
    %14 = tpu.reciprocal %13 {approx = true} : vector<2x4xf32> -> vector<2x4xf32>
    %15 = vector.shape_cast %14 : vector<2x4xf32> to vector<2x1x4xf32>
    %16 = vector.broadcast %15 : vector<2x1x4xf32> to vector<2x16x4xf32>
    %17 = arith.mulf %12, %16 : vector<2x16x4xf32>
    %18 = vector.shape_cast %17 : vector<2x16x4xf32> to vector<32x4xf32>
    %19 = arith.truncf %18 : vector<32x4xf32> to vector<32x4xbf16>
    %c0_9 = arith.constant 0 : index
    %c0_10 = arith.constant 0 : index
    %20 = vector.load %arg4[%c0_9, %c0_10] : memref<4x64xbf16, #tpu.memory_space<vmem>>, vector<4x64xbf16>
    %cst_11 = arith.constant dense<0.000000e+00> : vector<32x64xf32>
    %21 = tpu.matmul %19, %20, %cst_11 {dimension_numbers = #tpu.dot_dimension_numbers<[1], [0], [0], [1], [0, 0, 1, 1], [], []>} : vector<32x4xbf16>, vector<4x64xbf16>, vector<32x64xf32> -> vector<32x64xf32>
    %c0_12 = arith.constant 0 : index
    %c0_13 = arith.constant 0 : index
    %22 = vector.load %arg5[%c0_12, %c0_13] : memref<2x32xbf16, #tpu.memory_space<vmem>>, vector<2x32xbf16>
    %23 = arith.mulf %21, %4 : vector<32x64xf32>
    %24 = arith.truncf %23 : vector<32x64xf32> to vector<32x64xbf16>
    %cst_14 = arith.constant dense<0.000000e+00> : vector<2x64xf32>
    %25 = tpu.matmul %22, %24, %cst_14 {dimension_numbers = #tpu.dot_dimension_numbers<[1], [0], [0], [1], [0, 0, 1, 1], [], []>} : vector<2x32xbf16>, vector<32x64xbf16>, vector<2x64xf32> -> vector<2x64xf32>
    %26 = arith.truncf %25 : vector<2x64xf32> to vector<2x64xbf16>
    %c0_15 = arith.constant 0 : index
    %c0_16 = arith.constant 0 : index
    %27 = vector.load %arg6[%c0_15, %c0_16] : memref<64x32xbf16, #tpu.memory_space<vmem>>, vector<64x32xbf16>
    %cst_17 = arith.constant dense<0.000000e+00> : vector<2x32xf32>
    %28 = tpu.matmul %26, %27, %cst_17 {dimension_numbers = #tpu.dot_dimension_numbers<[1], [0], [0], [1], [0, 0, 1, 1], [], []>} : vector<2x64xbf16>, vector<64x32xbf16>, vector<2x32xf32> -> vector<2x32xf32>
    %c0_18 = arith.constant 0 : index
    %c0_19 = arith.constant 0 : index
    %29 = vector.load %arg7[%c0_18, %c0_19] : memref<1x32xf32, #tpu.memory_space<vmem>>, vector<1x32xf32>
    %30 = vector.broadcast %29 : vector<1x32xf32> to vector<2x32xf32>
    %31 = arith.addf %28, %30 : vector<2x32xf32>
    %c0_20 = arith.constant 0 : index
    %c0_21 = arith.constant 0 : index
    %c0_22 = arith.constant 0 : index
    %32 = vector.load %arg8[%c0_20, %c0_21, %c0_22] : memref<1x2x32xf32, #tpu.memory_space<vmem>>, vector<1x2x32xf32>
    %33 = vector.shape_cast %32 : vector<1x2x32xf32> to vector<2x32xf32>
    %34 = vector.shape_cast %31 : vector<2x32xf32> to vector<1x2x32xf32>
    tpu.vector_store %arg8[%c0_20, %c0_21, %c0_22], %34 {strides = array<i32>} : memref<1x2x32xf32, #tpu.memory_space<vmem>>, vector<1x2x32xf32>,
    return
  }
  func.func @transform_0(%arg0: i32) -> (i32, i32, i32) {
    %c0_i32 = arith.constant 0 : i32
    %c0_i32_0 = arith.constant 0 : i32
    %c0_i32_1 = arith.constant 0 : i32
    return %arg0, %c0_i32, %c0_i32_0 : i32, i32, i32
  }
  func.func @transform_1(%arg0: i32) -> (i32, i32) {
    %c0_i32 = arith.constant 0 : i32
    %c0_i32_0 = arith.constant 0 : i32
    %c0_i32_1 = arith.constant 0 : i32
    return %c0_i32, %c0_i32_0 : i32, i32
  }
  func.func @transform_2(%arg0: i32) -> (i32, i32) {
    %c0_i32 = arith.constant 0 : i32
    %c0_i32_0 = arith.constant 0 : i32
    %c0_i32_1 = arith.constant 0 : i32
    return %c0_i32, %c0_i32_0 : i32, i32
  }
  func.func @transform_3(%arg0: i32) -> (i32, i32) {
    %c0_i32 = arith.constant 0 : i32
    %c0_i32_0 = arith.constant 0 : i32
    %c0_i32_1 = arith.constant 0 : i32
    return %c0_i32, %c0_i32_0 : i32, i32
  }
  func.func @transform_4(%arg0: i32) -> (i32, i32) {
    %c0_i32 = arith.constant 0 : i32
    %c0_i32_0 = arith.constant 0 : i32
    %c0_i32_1 = arith.constant 0 : i32
    return %c0_i32, %c0_i32_0 : i32, i32
  }
  func.func @transform_5(%arg0: i32) -> (i32, i32) {
    %c0_i32 = arith.constant 0 : i32
    %c0_i32_0 = arith.constant 0 : i32
    %c0_i32_1 = arith.constant 0 : i32
    return %c0_i32, %c0_i32_0 : i32, i32
  }
  func.func @transform_6(%arg0: i32) -> (i32, i32) {
    %c0_i32 = arith.constant 0 : i32
    %c0_i32_0 = arith.constant 0 : i32
    %c0_i32_1 = arith.constant 0 : i32
    return %c0_i32, %c0_i32_0 : i32, i32
  }
  func.func @transform_7(%arg0: i32) -> (i32, i32, i32) {
    %c0_i32 = arith.constant 0 : i32
    %c0_i32_0 = arith.constant 0 : i32
    %c0_i32_1 = arith.constant 0 : i32
    return %arg0, %c0_i32, %c0_i32_0 : i32, i32, i32
  }
}

module attributes {stable_mosaic.version = 11 : i64} {
  func.func @_attention_readout_kernel(%arg0: i32, %arg1: memref<2x16x128xf32, #tpu.memory_space<vmem>>, %arg2: memref<128x4xbf16, #tpu.memory_space<vmem>>, %arg3: memref<128x64xbf16, #tpu.memory_space<vmem>>, %arg4: memref<4x64xbf16, #tpu.memory_space<vmem>>, %arg5: memref<2x32xbf16, #tpu.memory_space<vmem>>, %arg6: memref<64x32xbf16, #tpu.memory_space<vmem>>, %arg7: memref<1x32xf32, #tpu.memory_space<vmem>>, %arg8: memref<1x2x32xf32, #tpu.memory_space<vmem>>) attributes {dimension_semantics = [#tpu.dimension_semantics<parallel>], iteration_bounds = array<i64: 2>, scalar_prefetch = 0 : i64, scratch_operands = 0 : i64, tpu.core_type = #tpu.core_type<tc>, window_params = [{transform_indices = @transform_0, window_bounds = array<i64: 2, 16, 128>}, {pipeline_mode = #tpu.pipeline_mode<synchronous>, transform_indices = @transform_1, window_bounds = array<i64: 128, 4>}, {pipeline_mode = #tpu.pipeline_mode<synchronous>, transform_indices = @transform_2, window_bounds = array<i64: 128, 64>}, {pipeline_mode = #tpu.pipeline_mode<synchronous>, transform_indices = @transform_3, window_bounds = array<i64: 4, 64>}, {pipeline_mode = #tpu.pipeline_mode<synchronous>, transform_indices = @transform_4, window_bounds = array<i64: 2, 32>}, {pipeline_mode = #tpu.pipeline_mode<synchronous>, transform_indices = @transform_5, window_bounds = array<i64: 64, 32>}, {pipeline_mode = #tpu.pipeline_mode<synchronous>, transform_indices = @transform_6, window_bounds = array<i64: 1, 32>}, {transform_indices = @transform_7, window_bounds = array<i64: 1, 2, 32>}]} {
    %c0 = arith.constant 0 : index
    %c0_0 = arith.constant 0 : index
    %c0_1 = arith.constant 0 : index
    %0 = vector.load %arg1[%c0, %c0_0, %c0_1] : memref<2x16x128xf32, #tpu.memory_space<vmem>>, vector<2x16x128xf32>
    %1 = arith.truncf %0 : vector<2x16x128xf32> to vector<2x16x128xbf16>
    %2 = vector.shape_cast %1 : vector<2x16x128xbf16> to vector<32x128xbf16>
    %c0_2 = arith.constant 0 : index
    %c0_3 = arith.constant 0 : index
    %3 = vector.load %arg3[%c0_2, %c0_3] : memref<128x64xbf16, #tpu.memory_space<vmem>>, vector<128x64xbf16>
    %cst = arith.constant dense<0.000000e+00> : vector<32x64xf32>
    %4 = tpu.matmul %2, %3, %cst {dimension_numbers = #tpu.dot_dimension_numbers<[1], [0], [0], [1], [0, 0, 1, 1], [], []>} : vector<32x128xbf16>, vector<128x64xbf16>, vector<32x64xf32> -> vector<32x64xf32>
    %c0_4 = arith.constant 0 : index
    %c0_5 = arith.constant 0 : index
    %5 = vector.load %arg2[%c0_4, %c0_5] : memref<128x4xbf16, #tpu.memory_space<vmem>>, vector<128x4xbf16>
    %cst_6 = arith.constant dense<0.000000e+00> : vector<32x4xf32>
    %6 = tpu.matmul %2, %5, %cst_6 {dimension_numbers = #tpu.dot_dimension_numbers<[1], [0], [0], [1], [0, 0, 1, 1], [], []>} : vector<32x128xbf16>, vector<128x4xbf16>, vector<32x4xf32> -> vector<32x4xf32>
    %7 = vector.shape_cast %6 : vector<32x4xf32> to vector<2x16x4xf32>
    %cst_7 = arith.constant dense<0xFF800000> : vector<2x4xf32>
    %8 = vector.multi_reduction <maximumf>, %7, %cst_7 [1] : vector<2x16x4xf32> to vector<2x4xf32>
    %9 = vector.shape_cast %8 : vector<2x4xf32> to vector<2x1x4xf32>
    %10 = vector.broadcast %9 : vector<2x1x4xf32> to vector<2x16x4xf32>
    %11 = arith.subf %7, %10 : vector<2x16x4xf32>
    %12 = math.exp %11 : vector<2x16x4xf32>
    %cst_8 = arith.constant dense<0.000000e+00> : vector<2x4xf32>
    %13 = vector.multi_reduction <add>, %12, %cst_8 [1] : vector<2x16x4xf32> to vector<2x4xf32>
    %14 = tpu.reciprocal %13 {approx = true} : vector<2x4xf32> -> vector<2x4xf32>
    %15 = vector.shape_cast %14 : vector<2x4xf32> to vector<2x1x4xf32>
    %16 = vector.broadcast %15 : vector<2x1x4xf32> to vector<2x16x4xf32>
    %17 = arith.mulf %12, %16 : vector<2x16x4xf32>
    %18 = vector.shape_cast %17 : vector<2x16x4xf32> to vector<32x4xf32>
    %19 = arith.truncf %18 : vector<32x4xf32> to vector<32x4xbf16>
    %c0_9 = arith.constant 0 : index
    %c0_10 = arith.constant 0 : index
    %20 = vector.load %arg4[%c0_9, %c0_10] : memref<4x64xbf16, #tpu.memory_space<vmem>>, vector<4x64xbf16>
    %cst_11 = arith.constant dense<0.000000e+00> : vector<32x64xf32>
    %21 = tpu.matmul %19, %20, %cst_11 {dimension_numbers = #tpu.dot_dimension_numbers<[1], [0], [0], [1], [0, 0, 1, 1], [], []>} : vector<32x4xbf16>, vector<4x64xbf16>, vector<32x64xf32> -> vector<32x64xf32>
    %c0_12 = arith.constant 0 : index
    %c0_13 = arith.constant 0 : index
    %22 = vector.load %arg5[%c0_12, %c0_13] : memref<2x32xbf16, #tpu.memory_space<vmem>>, vector<2x32xbf16>
    %23 = arith.mulf %21, %4 : vector<32x64xf32>
    %24 = arith.truncf %23 : vector<32x64xf32> to vector<32x64xbf16>
    %cst_14 = arith.constant dense<0.000000e+00> : vector<2x64xf32>
    %25 = tpu.matmul %22, %24, %cst_14 {dimension_numbers = #tpu.dot_dimension_numbers<[1], [0], [0], [1], [0, 0, 1, 1], [], []>} : vector<2x32xbf16>, vector<32x64xbf16>, vector<2x64xf32> -> vector<2x64xf32>
    %26 = arith.truncf %25 : vector<2x64xf32> to vector<2x64xbf16>
    %c0_15 = arith.constant 0 : index
    %c0_16 = arith.constant 0 : index
    %27 = vector.load %arg6[%c0_15, %c0_16] : memref<64x32xbf16, #tpu.memory_space<vmem>>, vector<64x32xbf16>
    %cst_17 = arith.constant dense<0.000000e+00> : vector<2x32xf32>
    %28 = tpu.matmul %26, %27, %cst_17 {dimension_numbers = #tpu.dot_dimension_numbers<[1], [0], [0], [1], [0, 0, 1, 1], [], []>} : vector<2x64xbf16>, vector<64x32xbf16>, vector<2x32xf32> -> vector<2x32xf32>
    %c0_18 = arith.constant 0 : index
    %c0_19 = arith.constant 0 : index
    %29 = vector.load %arg7[%c0_18, %c0_19] : memref<1x32xf32, #tpu.memory_space<vmem>>, vector<1x32xf32>
    %30 = vector.broadcast %29 : vector<1x32xf32> to vector<2x32xf32>
    %31 = arith.addf %28, %30 : vector<2x32xf32>
    %c0_20 = arith.constant 0 : index
    %c0_21 = arith.constant 0 : index
    %c0_22 = arith.constant 0 : index
    %32 = vector.load %arg8[%c0_20, %c0_21, %c0_22] : memref<1x2x32xf32, #tpu.memory_space<vmem>>, vector<1x2x32xf32>
    %33 = vector.shape_cast %32 : vector<1x2x32xf32> to vector<2x32xf32>
    %34 = vector.shape_cast %31 : vector<2x32xf32> to vector<1x2x32xf32>
    tpu.vector_store %arg8[%c0_20, %c0_21, %c0_22], %34 {strides = array<i32>} : memref<1x2x32xf32, #tpu.memory_space<vmem>>, vector<1x2x32xf32>,
    return
  }
  func.func @transform_0(%arg0: i32) -> (i32, i32, i32) {
    %c0_i32 = arith.constant 0 : i32
    %c0_i32_0 = arith.constant 0 : i32
    %c0_i32_1 = arith.constant 0 : i32
    return %arg0, %c0_i32, %c0_i32_0 : i32, i32, i32
  }
  func.func @transform_1(%arg0: i32) -> (i32, i32) {
    %c0_i32 = arith.constant 0 : i32
    %c0_i32_0 = arith.constant 0 : i32
    %c0_i32_1 = arith.constant 0 : i32
    return %c0_i32, %c0_i32_0 : i32, i32
  }
  func.func @transform_2(%arg0: i32) -> (i32, i32) {
    %c0_i32 = arith.constant 0 : i32
    %c0_i32_0 = arith.constant 0 : i32
    %c0_i32_1 = arith.constant 0 : i32
    return %c0_i32, %c0_i32_0 : i32, i32
  }
  func.func @transform_3(%arg0: i32) -> (i32, i32) {
    %c0_i32 = arith.constant 0 : i32
    %c0_i32_0 = arith.constant 0 : i32
    %c0_i32_1 = arith.constant 0 : i32
    return %c0_i32, %c0_i32_0 : i32, i32
  }
  func.func @transform_4(%arg0: i32) -> (i32, i32) {
    %c0_i32 = arith.constant 0 : i32
    %c0_i32_0 = arith.constant 0 : i32
    %c0_i32_1 = arith.constant 0 : i32
    return %c0_i32, %c0_i32_0 : i32, i32
  }
  func.func @transform_5(%arg0: i32) -> (i32, i32) {
    %c0_i32 = arith.constant 0 : i32
    %c0_i32_0 = arith.constant 0 : i32
    %c0_i32_1 = arith.constant 0 : i32
    return %c0_i32, %c0_i32_0 : i32, i32
  }
  func.func @transform_6(%arg0: i32) -> (i32, i32) {
    %c0_i32 = arith.constant 0 : i32
    %c0_i32_0 = arith.constant 0 : i32
    %c0_i32_1 = arith.constant 0 : i32
    return %c0_i32, %c0_i32_0 : i32, i32
  }
  func.func @transform_7(%arg0: i32) -> (i32, i32, i32) {
    %c0_i32 = arith.constant 0 : i32
    %c0_i32_0 = arith.constant 0 : i32
    %c0_i32_1 = arith.constant 0 : i32
    return %arg0, %c0_i32, %c0_i32_0 : i32, i32, i32
  }
}

</mosaic_0001>

<llo_original>
// kernel: tpu_custom_call.1
$region0: #{tpu_custom_call.1}
  #allocation0 [shape = 'u32[]', space=smem, size = 0x4, offset = 0x4, fixed_abs, tag = 'smem constant byte address 0x4 - core index']
  #allocation1 [shape = 'u32[144,128]{1,0:T(1,128)}', space=vmem, size = 0x12000, scoped, tag = 'internal scratch']
  %s0 = inlined_call_operand.vmem [shape: f32[4,16,128], index: 0, kind: input, shape index: {}]
  %s1 = inlined_call_operand.vmem [shape: bf16[128,4], index: 1, kind: input, shape index: {}]
  %s2 = inlined_call_operand.vmem [shape: bf16[128,64], index: 2, kind: input, shape index: {}]
  %s3 = inlined_call_operand.vmem [shape: bf16[4,64], index: 3, kind: input, shape index: {}]
  %s4 = inlined_call_operand.vmem [shape: bf16[2,32], index: 4, kind: input, shape index: {}]
  %s5 = inlined_call_operand.vmem [shape: bf16[64,32], index: 5, kind: input, shape index: {}]
  %s6 = inlined_call_operand.vmem [shape: f32[1,32], index: 6, kind: input, shape index: {}]
  %s7 = inlined_call_operand.hbm [shape: f32[2,2,32], index: 7, kind: output, shape index: {}]
  %s8 = sld [smem:[#allocation0]]
  $region61: #{tpu_custom_call.1} parent=0
    _
  %s10 = ssub.s32 1, %s8
  %s11 = scalar_select 0, %s10, %s8
  $region1: #{tpu_custom_call.1} parent=0
    #allocation2 [shape = 'u8[2048]{0}', space=vmem, size = 0x800, scoped, tag = 'output window, operand 0']
    #allocation3 [shape = 's32[2]{0}', space=sflag, size = 0x8, scoped, tag = 'scoped memory for tpu_custom_call.1']
    %12 = vsyncpa [#allocation3], 0
    %s13 = scalar_lea.sflag [#allocation3], 1
    %14 = vsyncpa %s13, 0
    loop: start=0, step=1, limit=4
    $region2: #{tpu_custom_call.1} parent=1 // loop_pre_header
      _
    $region3: #{tpu_custom_call.1} parent=1 // loop_header
      %s16 = sphi 0, %s20
      %p17 = scmp.ge.s32.totalorder %s16, 4
      %s26 = sphi 0, %s28
      %s29 = sphi 0, %s26
      %s30 = sphi 0, %s29
      %s46 = sphi 0, %s30
      %s50 = sphi 0, %s50
      %s52 = sphi 0, %s50
      %s53 = sphi 0, %s52
      %s67 = sphi 0, %s53
      %s71 = sphi 0, %s71
      %s73 = sphi 0, %s71
      %s74 = sphi 0, %s73
      %s88 = sphi 0, %s74
      %s92 = sphi 0, %s92
      %s94 = sphi 0, %s92
      %s95 = sphi 0, %s94
      %s109 = sphi 0, %s95
      %s113 = sphi 0, %s113
      %s115 = sphi 0, %s113
      %s116 = sphi 0, %s115
      %s130 = sphi 0, %s116
      %s134 = sphi 0, %s134
      %s136 = sphi 0, %s134
      %s137 = sphi 0, %s136
      %s151 = sphi 0, %s137
      %s155 = sphi 0, %s155
      %s157 = sphi 0, %s155
      %s158 = sphi 0, %s157
      %s172 = sphi 0, %s158
      %s178 = sphi 0, %s180
      %s181 = sphi 0, %s178
      %s182 = sphi 0, %s181
      %s198 = sphi 0, %s182
    $region4: #{tpu_custom_call.1} parent=1 // loop_header_branch
      %19 = sbr.rel (%p17) target = $region8
    $region5: #{tpu_custom_call.1} parent=1 // loop_body
      %s21 = ssub.s32 %s16, 1
      %s22 = ssub.s32 %s16, 2
      %s23 = sadd.s32 %s16, 1
      %s24 = ssub.s32 %s16, %s23
      %p25 = scmp.eq.s32.totalorder %s24, 0
      %s27 = sadd.s32 %s26, 1
      %s28 = scalar_select %p25, %s26, %s27
      %p31 = pneg %p25
      %p32 = scmp.eq.s32.totalorder %s16, 1
      %p33 = por %p31, %p32
      %p34 = scmp.ne.s32.totalorder %s26, %s29
      %p35 = scmp.eq.s32.totalorder %s16, 0
      %p36 = por %p34, %p35
      %p37 = scmp.ne.s32.totalorder %s26, %s29
      %p38 = scmp.eq.s32.totalorder %s21, 1
      %p39 = por %p37, %p38
      %p40 = scmp.ne.s32.totalorder %s29, %s30
      %p41 = scmp.eq.s32.totalorder %s21, 0
      %p42 = por %p40, %p41
      %p43 = scmp.ne.s32.totalorder %s29, %s30
      %p44 = scmp.eq.s32.totalorder %s22, 1
      %p45 = por %p43, %p44
      %p47 = scmp.ne.s32.totalorder %s30, %s46
      %p48 = scmp.eq.s32.totalorder %s22, 0
      %p49 = por %p47, %p48
      %s51 = sadd.s32 %s50, 1
      %p54 = scmp.eq.s32.totalorder %s16, 1
      %p55 = scmp.ne.s32.totalorder %s50, %s52
      %p56 = scmp.eq.s32.totalorder %s16, 0
      %p57 = por %p55, %p56
      %p58 = scmp.ne.s32.totalorder %s50, %s52
      %p59 = scmp.eq.s32.totalorder %s21, 1
      %p60 = por %p58, %p59
      %p61 = scmp.ne.s32.totalorder %s52, %s53
      %p62 = scmp.eq.s32.totalorder %s21, 0
      %p63 = por %p61, %p62
      %p64 = scmp.ne.s32.totalorder %s52, %s53
      %p65 = scmp.eq.s32.totalorder %s22, 1
      %p66 = por %p64, %p65
      %p68 = scmp.ne.s32.totalorder %s53, %s67
      %p69 = scmp.eq.s32.totalorder %s22, 0
      %p70 = por %p68, %p69
      %s72 = sadd.s32 %s71, 1
      %p75 = scmp.eq.s32.totalorder %s16, 1
      %p76 = scmp.ne.s32.totalorder %s71, %s73
      %p77 = scmp.eq.s32.totalorder %s16, 0
      %p78 = por %p76, %p77
      %p79 = scmp.ne.s32.totalorder %s71, %s73
      %p80 = scmp.eq.s32.totalorder %s21, 1
      %p81 = por %p79, %p80
      %p82 = scmp.ne.s32.totalorder %s73, %s74
      %p83 = scmp.eq.s32.totalorder %s21, 0
      %p84 = por %p82, %p83
      %p85 = scmp.ne.s32.totalorder %s73, %s74
      %p86 = scmp.eq.s32.totalorder %s22, 1
      %p87 = por %p85, %p86
      %p89 = scmp.ne.s32.totalorder %s74, %s88
      %p90 = scmp.eq.s32.totalorder %s22, 0
      %p91 = por %p89, %p90
      %s93 = sadd.s32 %s92, 1
      %p96 = scmp.eq.s32.totalorder %s16, 1
      %p97 = scmp.ne.s32.totalorder %s92, %s94
      %p98 = scmp.eq.s32.totalorder %s16, 0
      %p99 = por %p97, %p98
      %p100 = scmp.ne.s32.totalorder %s92, %s94
      %p101 = scmp.eq.s32.totalorder %s21, 1
      %p102 = por %p100, %p101
      %p103 = scmp.ne.s32.totalorder %s94, %s95
      %p104 = scmp.eq.s32.totalorder %s21, 0
      %p105 = por %p103, %p104
      %p106 = scmp.ne.s32.totalorder %s94, %s95
      %p107 = scmp.eq.s32.totalorder %s22, 1
      %p108 = por %p106, %p107
      %p110 = scmp.ne.s32.totalorder %s95, %s109
      %p111 = scmp.eq.s32.totalorder %s22, 0
      %p112 = por %p110, %p111
      %s114 = sadd.s32 %s113, 1
      %p117 = scmp.eq.s32.totalorder %s16, 1
      %p118 = scmp.ne.s32.totalorder %s113, %s115
      %p119 = scmp.eq.s32.totalorder %s16, 0
      %p120 = por %p118, %p119
      %p121 = scmp.ne.s32.totalorder %s113, %s115
      %p122 = scmp.eq.s32.totalorder %s21, 1
      %p123 = por %p121, %p122
      %p124 = scmp.ne.s32.totalorder %s115, %s116
      %p125 = scmp.eq.s32.totalorder %s21, 0
      %p126 = por %p124, %p125
      %p127 = scmp.ne.s32.totalorder %s115, %s116
      %p128 = scmp.eq.s32.totalorder %s22, 1
      %p129 = por %p127, %p128
      %p131 = scmp.ne.s32.totalorder %s116, %s130
      %p132 = scmp.eq.s32.totalorder %s22, 0
      %p133 = por %p131, %p132
      %s135 = sadd.s32 %s134, 1
      %p138 = scmp.eq.s32.totalorder %s16, 1
      %p139 = scmp.ne.s32.totalorder %s134, %s136
      %p140 = scmp.eq.s32.totalorder %s16, 0
      %p141 = por %p139, %p140
      %p142 = scmp.ne.s32.totalorder %s134, %s136
      %p143 = scmp.eq.s32.totalorder %s21, 1
      %p144 = por %p142, %p143
      %p145 = scmp.ne.s32.totalorder %s136, %s137
      %p146 = scmp.eq.s32.totalorder %s21, 0
      %p147 = por %p145, %p146
      %p148 = scmp.ne.s32.totalorder %s136, %s137
      %p149 = scmp.eq.s32.totalorder %s22, 1
      %p150 = por %p148, %p149
      %p152 = scmp.ne.s32.totalorder %s137, %s151
      %p153 = scmp.eq.s32.totalorder %s22, 0
      %p154 = por %p152, %p153
      %s156 = sadd.s32 %s155, 1
      %p159 = scmp.eq.s32.totalorder %s16, 1
      %p160 = scmp.ne.s32.totalorder %s155, %s157
      %p161 = scmp.eq.s32.totalorder %s16, 0
      %p162 = por %p160, %p161
      %p163 = scmp.ne.s32.totalorder %s155, %s157
      %p164 = scmp.eq.s32.totalorder %s21, 1
      %p165 = por %p163, %p164
      %p166 = scmp.ne.s32.totalorder %s157, %s158
      %p167 = scmp.eq.s32.totalorder %s21, 0
      %p168 = por %p166, %p167
      %p169 = scmp.ne.s32.totalorder %s157, %s158
      %p170 = scmp.eq.s32.totalorder %s22, 1
      %p171 = por %p169, %p170
      %p173 = scmp.ne.s32.totalorder %s158, %s172
      %p174 = scmp.eq.s32.totalorder %s22, 0
      %p175 = por %p173, %p174
      %s176 = ssub.s32 %s16, %s23
      %p177 = scmp.eq.s32.totalorder %s176, 0
      %s179 = sadd.s32 %s178, 1
      %s180 = scalar_select %p177, %s178, %s179
      %p183 = pneg %p177
      %p184 = scmp.eq.s32.totalorder %s16, 1
      %p185 = por %p183, %p184
      %p186 = scmp.ne.s32.totalorder %s178, %s181
      %p187 = scmp.eq.s32.totalorder %s16, 0
      %p188 = por %p186, %p187
      %p189 = scmp.ne.s32.totalorder %s178, %s181
      %p190 = scmp.eq.s32.totalorder %s21, 1
      %p191 = por %p189, %p190
      %p192 = scmp.ne.s32.totalorder %s181, %s182
      %p193 = scmp.eq.s32.totalorder %s21, 0
      %p194 = por %p192, %p193
      %p195 = scmp.ne.s32.totalorder %s181, %s182
      %p196 = scmp.eq.s32.totalorder %s22, 1
      %p197 = por %p195, %p196
      %p199 = scmp.ne.s32.totalorder %s182, %s198
      %p200 = scmp.eq.s32.totalorder %s22, 0
      %p201 = por %p199, %p200
      %p202 = scmp.le.s32.totalorder 1, %s16
      %p203 = scmp.lt.s32.totalorder %s16, 3
      %p204 = pnand %p202, %p203
      %p205 = pneg %p204
      // Predicated region
      $region9: #{tpu_custom_call.1} parent=5 // pred_check
        _
      $region10: #{tpu_custom_call.1} parent=5 // pred_check_branch
        %207 = sbr.rel (%p204) target = $region12
      $region11: #{tpu_custom_call.1} parent=5 // pred_region
        %s208 = ssub.s32 %s16, 1
        // Predicated region
        $region13: #{tpu_custom_call.1} parent=11 // pred_check
          %p209 = pneg %p63
        $region14: #{tpu_custom_call.1} parent=11 // pred_check_branch
          %211 = sbr.rel (%p209) target = $region16
        $region15: #{tpu_custom_call.1} parent=11 // pred_region
          _
        $region16: #{tpu_custom_call.1} parent=11 // pred_fallthru
          _
        // Predicated region
        $region17: #{tpu_custom_call.1} parent=11 // pred_check
          %p212 = pneg %p84
        $region18: #{tpu_custom_call.1} parent=11 // pred_check_branch
          %214 = sbr.rel (%p212) target = $region20
        $region19: #{tpu_custom_call.1} parent=11 // pred_region
          _
        $region20: #{tpu_custom_call.1} parent=11 // pred_fallthru
          _
        // Predicated region
        $region21: #{tpu_custom_call.1} parent=11 // pred_check
          %p215 = pneg %p105
        $region22: #{tpu_custom_call.1} parent=11 // pred_check_branch
          %217 = sbr.rel (%p215) target = $region24
        $region23: #{tpu_custom_call.1} parent=11 // pred_region
          _
        $region24: #{tpu_custom_call.1} parent=11 // pred_fallthru
          _
        // Predicated region
        $region25: #{tpu_custom_call.1} parent=11 // pred_check
          %p218 = pneg %p126
        $region26: #{tpu_custom_call.1} parent=11 // pred_check_branch
          %220 = sbr.rel (%p218) target = $region28
        $region27: #{tpu_custom_call.1} parent=11 // pred_region
          _
        $region28: #{tpu_custom_call.1} parent=11 // pred_fallthru
          _
        // Predicated region
        $region29: #{tpu_custom_call.1} parent=11 // pred_check
          %p221 = pneg %p147
        $region30: #{tpu_custom_call.1} parent=11 // pred_check_branch
          %223 = sbr.rel (%p221) target = $region32
        $region31: #{tpu_custom_call.1} parent=11 // pred_region
          _
        $region32: #{tpu_custom_call.1} parent=11 // pred_fallthru
          _
        // Predicated region
        $region33: #{tpu_custom_call.1} parent=11 // pred_check
          %p224 = pneg %p168
        $region34: #{tpu_custom_call.1} parent=11 // pred_check_branch
          %226 = sbr.rel (%p224) target = $region36
        $region35: #{tpu_custom_call.1} parent=11 // pred_region
          _
        $region36: #{tpu_custom_call.1} parent=11 // pred_fallthru
          _
      $region12: #{tpu_custom_call.1} parent=5 // pred_fallthru
        _
      %p227 = scmp.lt.s32.totalorder %s16, 2
      // Predicated region
      $region37: #{tpu_custom_call.1} parent=5 // pred_check
        %p228 = pneg %p227
      $region38: #{tpu_custom_call.1} parent=5 // pred_check_branch
        %230 = sbr.rel (%p228) target = $region40
      $region39: #{tpu_custom_call.1} parent=5 // pred_region
        // Predicated region
        $region41: #{tpu_custom_call.1} parent=39 // pred_check
          %p231 = pneg %p36
        $region42: #{tpu_custom_call.1} parent=39 // pred_check_branch
          %233 = sbr.rel (%p231) target = $region44
        $region43: #{tpu_custom_call.1} parent=39 // pred_region
          %s234 = smul.u32 2, %s16
          %p235 = scmp.lt.s32.totalorder %s234, 3
          %s236 = scalar_select %p235, %s234, 3
          %s237 = smul.addr %s236, 2
          %s238 = smul.addr %s237, 8
          %s239 = scalar_lea.vmem %s0, %s238
          %s240 = smul.u32 2, %s16
        $region44: #{tpu_custom_call.1} parent=39 // pred_fallthru
          _
      $region40: #{tpu_custom_call.1} parent=5 // pred_fallthru
        _
      %p241 = scmp.le.s32.totalorder 1, %s16
      %p242 = scmp.lt.s32.totalorder %s16, 3
      %p243 = pnand %p241, %p242
      %p244 = pneg %p243
      // Predicated region
      $region45: #{tpu_custom_call.1} parent=5 // pred_check
        _
      $region46: #{tpu_custom_call.1} parent=5 // pred_check_branch
        %246 = sbr.rel (%p243) target = $region48
      $region47: #{tpu_custom_call.1} parent=5 // pred_region
        %s247 = ssub.s32 %s16, 1
        %s248 = smul.u32 2, %s21
        %p249 = scmp.lt.s32.totalorder %s248, 3
        %s250 = scalar_select %p249, %s248, 3
        %s251 = smul.addr %s250, 2
        %s252 = smul.addr %s251, 8
        %s253 = scalar_lea.vmem %s0, %s252
        %p254 = pneg %p42
        %p255 = pneg %p39
        %p256 = pneg %p63
        %p257 = pneg %p60
        %p258 = pneg %p84
        %p259 = pneg %p81
        %p260 = pneg %p105
        %p261 = pneg %p102
        %p262 = pneg %p126
        %p263 = pneg %p123
        %p264 = pneg %p147
        %p265 = pneg %p144
        %p266 = pneg %p168
        %p267 = pneg %p165
        %p268 = pneg %p194
        %p269 = pneg %p191
        %s270 = sand.u32 %s181, 1
        %s271 = scalar_lea.sflag [#allocation3], %s270
        %s272 = sand.u32 %s181, 1
        %s273 = smul.addr %s272, 2
        %s274 = scalar_lea.vmem [#allocation2], %s273
        %s275 = smul.u32 2, %s21
        %p276 = scmp.lt.s32.totalorder %s275, 3
        %s277 = scalar_select %p276, %s275, 3
        %s278 = smul.addr %s277, 2
        %s279 = smul.addr %s278, 8
        %s280 = scalar_lea.vmem %s0, %s279
        %s281 = smul.u32 2, %s21
        %v283 = vld [vmem:[%s280] sm:$0xff]
        %v284 = vld [vmem:[%s280 + $0x8] sm:$0xff]
        %v285 = vld [vmem:[%s280 + $0x10] sm:$0xff]
        %v286 = vld [vmem:[%s280 + $0x18] sm:$0xff]
        %v287 = vpack.c.bf16 %v284, %v283
        %v288 = vpack.c.bf16 %v286, %v285
        %v289 = vld [vmem:[%s2] sm:$0xf]
        %v290 = vld [vmem:[%s2 + $0x4] sm:$0xf]
        %v291 = vld [vmem:[%s2 + $0x8] sm:$0xf]
        %v292 = vld [vmem:[%s2 + $0xc] sm:$0xf]
        %v293 = vld [vmem:[%s2 + $0x10] sm:$0xf]
        %v294 = vld [vmem:[%s2 + $0x14] sm:$0xf]
        %v295 = vld [vmem:[%s2 + $0x18] sm:$0xf]
        %v296 = vld [vmem:[%s2 + $0x1c] sm:$0xf]
        %v297 = vld [vmem:[%s2 + $0x20] sm:$0xf]
        %v298 = vld [vmem:[%s2 + $0x24] sm:$0xf]
        %v299 = vld [vmem:[%s2 + $0x28] sm:$0xf]
        %v300 = vld [vmem:[%s2 + $0x2c] sm:$0xf]
        %v301 = vld [vmem:[%s2 + $0x30] sm:$0xf]
        %v302 = vld [vmem:[%s2 + $0x34] sm:$0xf]
        %v303 = vld [vmem:[%s2 + $0x38] sm:$0xf]
        %v304 = vld [vmem:[%s2 + $0x3c] sm:$0xf]
        %v321 = vunpack.c.l.b16 %v289
        %v322 = vunpack.c.l.b16 %v290
        %v323 = vunpack.c.l.b16 %v291
        %v324 = vunpack.c.l.b16 %v292
        %v325 = vunpack.c.l.b16 %v293
        %v326 = vunpack.c.l.b16 %v294
        %v327 = vunpack.c.l.b16 %v295
        %v328 = vunpack.c.l.b16 %v296
        %v329 = vunpack.c.l.b16 %v297
        %v330 = vunpack.c.l.b16 %v298
        %v331 = vunpack.c.l.b16 %v299
        %v332 = vunpack.c.l.b16 %v300
        %v333 = vunpack.c.l.b16 %v301
        %v334 = vunpack.c.l.b16 %v302
        %v335 = vunpack.c.l.b16 %v303
        %v336 = vunpack.c.l.b16 %v304
        %v337 = vpack.c.b16 %v322, %v321
        %v338 = vpack.c.b16 %v324, %v323
        %v339 = vpack.c.b16 %v326, %v325
        %v340 = vpack.c.b16 %v328, %v327
        %v341 = vpack.c.b16 %v330, %v329
        %v342 = vpack.c.b16 %v332, %v331
        %v343 = vpack.c.b16 %v334, %v333
        %v344 = vpack.c.b16 %v336, %v335
        %353 = vmatprep.subr.bf16.mxu0 0
        %354 = vmatpush1.bf16.msra.mxu0 %v337
        %355 = vmatprep.subr.bf16.mxu0 0
        %356 = vmatpush1.bf16.msra.mxu0 %v338
        %357 = vmatprep.subr.bf16.mxu0 0
        %358 = vmatpush1.bf16.msra.mxu0 %v339
        %359 = vmatprep.subr.bf16.mxu0 0
        %360 = vmatpush1.bf16.msra.mxu0 %v340
        %361 = vmatprep.subr.bf16.mxu0 0
        %362 = vmatpush1.bf16.msra.mxu0 %v341
        %363 = vmatprep.subr.bf16.mxu0 0
        %364 = vmatpush1.bf16.msra.mxu0 %v342
        %365 = vmatprep.subr.bf16.mxu0 0
        %366 = vmatpush1.bf16.msra.mxu0 %v343
        %367 = vmatprep.subr.bf16.mxu0 0
        %368 = vmatpush1.bf16.msra.mxu0 %v344
        %369 = vmatprep.subr.bf16.mxu0 0
        %370 = vmatpush1.bf16.msra.mxu0 0
        %371 = vmatprep.subr.bf16.mxu0 0
        %372 = vmatpush1.bf16.msra.mxu0 0
        %373 = vmatprep.subr.bf16.mxu0 0
        %374 = vmatpush1.bf16.msra.mxu0 0
        %375 = vmatprep.subr.bf16.mxu0 0
        %376 = vmatpush1.bf16.msra.mxu0 0
        %377 = vmatprep.subr.bf16.mxu0 0
        %378 = vmatpush1.bf16.msra.mxu0 0
        %379 = vmatprep.subr.bf16.mxu0 0
        %380 = vmatpush1.bf16.msra.mxu0 0
        %381 = vmatprep.subr.bf16.mxu0 0
        %382 = vmatpush1.bf16.msra.mxu0 0
        %383 = vmatprep.subr.bf16.mxu0 0
        %384 = vmatpush1.bf16.msra.mxu0 0
        %385 = vmatprep.mubr.bf16.mxu0 0
        %386 = vmatmul.mubr.bf16.gmra.mrb[0].mxu0 %v287
        %v387 = vpop.f32.mrb[0].mxu0
        %v388 = vadd.f32 0.0, %v387
        %v389 = vpop.f32.mrb[0].mxu0
        %v390 = vpop.f32.mrb[0].mxu0
        %v391 = vadd.f32 0.0, %v390
        %v392 = vpop.f32.mrb[0].mxu0
        %393 = vmatprep.mubr.bf16.mxu0 0
        %394 = vmatmul.mubr.bf16.gmra.mrb[0].mxu0 %v288
        %v395 = vpop.f32.mrb[0].mxu0
        %v396 = vadd.f32 0.0, %v395
        %v397 = vpop.f32.mrb[0].mxu0
        %v398 = vpop.f32.mrb[0].mxu0
        %v399 = vadd.f32 0.0, %v398
        %v400 = vpop.f32.mrb[0].mxu0
        %401 = vdwg.mxu0
        %v402 = vld [vmem:[%s1] sm:$0xf]
        %v403 = vld [vmem:[%s1 + $0x4] sm:$0xf]
        %v404 = vld [vmem:[%s1 + $0x8] sm:$0xf]
        %v405 = vld [vmem:[%s1 + $0xc] sm:$0xf]
        %v406 = vld [vmem:[%s1 + $0x10] sm:$0xf]
        %v407 = vld [vmem:[%s1 + $0x14] sm:$0xf]
        %v408 = vld [vmem:[%s1 + $0x18] sm:$0xf]
        %v409 = vld [vmem:[%s1 + $0x1c] sm:$0xf]
        %v410 = vld [vmem:[%s1 + $0x20] sm:$0xf]
        %v411 = vld [vmem:[%s1 + $0x24] sm:$0xf]
        %v412 = vld [vmem:[%s1 + $0x28] sm:$0xf]
        %v413 = vld [vmem:[%s1 + $0x2c] sm:$0xf]
        %v414 = vld [vmem:[%s1 + $0x30] sm:$0xf]
        %v415 = vld [vmem:[%s1 + $0x34] sm:$0xf]
        %v416 = vld [vmem:[%s1 + $0x38] sm:$0xf]
        %v417 = vld [vmem:[%s1 + $0x3c] sm:$0xf]
        %v434 = vunpack.c.l.b16 %v402
        %v435 = vunpack.c.l.b16 %v403
        %v436 = vunpack.c.l.b16 %v404
        %v437 = vunpack.c.l.b16 %v405
        %v438 = vunpack.c.l.b16 %v406
        %v439 = vunpack.c.l.b16 %v407
        %v440 = vunpack.c.l.b16 %v408
        %v441 = vunpack.c.l.b16 %v409
        %v442 = vunpack.c.l.b16 %v410
        %v443 = vunpack.c.l.b16 %v411
        %v444 = vunpack.c.l.b16 %v412
        %v445 = vunpack.c.l.b16 %v413
        %v446 = vunpack.c.l.b16 %v414
        %v447 = vunpack.c.l.b16 %v415
        %v448 = vunpack.c.l.b16 %v416
        %v449 = vunpack.c.l.b16 %v417
        %v450 = vpack.c.b16 %v435, %v434
        %v451 = vpack.c.b16 %v437, %v436
        %v452 = vpack.c.b16 %v439, %v438
        %v453 = vpack.c.b16 %v441, %v440
        %v454 = vpack.c.b16 %v443, %v442
        %v455 = vpack.c.b16 %v445, %v444
        %v456 = vpack.c.b16 %v447, %v446
        %v457 = vpack.c.b16 %v449, %v448
        %466 = vmatprep.subr.bf16.mxu0 0
        %467 = vmatpush1.bf16.msra.mxu0 %v450
        %468 = vmatprep.subr.bf16.mxu0 0
        %469 = vmatpush1.bf16.msra.mxu0 %v451
        %470 = vmatprep.subr.bf16.mxu0 0
        %471 = vmatpush1.bf16.msra.mxu0 %v452
        %472 = vmatprep.subr.bf16.mxu0 0
        %473 = vmatpush1.bf16.msra.mxu0 %v453
        %474 = vmatprep.subr.bf16.mxu0 0
        %475 = vmatpush1.bf16.msra.mxu0 %v454
        %476 = vmatprep.subr.bf16.mxu0 0
        %477 = vmatpush1.bf16.msra.mxu0 %v455
        %478 = vmatprep.subr.bf16.mxu0 0
        %479 = vmatpush1.bf16.msra.mxu0 %v456
        %480 = vmatprep.subr.bf16.mxu0 0
        %481 = vmatpush1.bf16.msra.mxu0 %v457
        %482 = vmatprep.subr.bf16.mxu0 0
        %483 = vmatpush1.bf16.msra.mxu0 0
        %484 = vmatprep.subr.bf16.mxu0 0
        %485 = vmatpush1.bf16.msra.mxu0 0
        %486 = vmatprep.subr.bf16.mxu0 0
        %487 = vmatpush1.bf16.msra.mxu0 0
        %488 = vmatprep.subr.bf16.mxu0 0
        %489 = vmatpush1.bf16.msra.mxu0 0
        %490 = vmatprep.subr.bf16.mxu0 0
        %491 = vmatpush1.bf16.msra.mxu0 0
        %492 = vmatprep.subr.bf16.mxu0 0
        %493 = vmatpush1.bf16.msra.mxu0 0
        %494 = vmatprep.subr.bf16.mxu0 0
        %495 = vmatpush1.bf16.msra.mxu0 0
        %496 = vmatprep.subr.bf16.mxu0 0
        %497 = vmatpush1.bf16.msra.mxu0 0
        %498 = vmatprep.mubr.bf16.mxu0 0
        %499 = vmatmul.mubr.bf16.gmra.mrb[0].mxu0 %v287
        %v500 = vpop.f32.mrb[0].mxu0
        %v501 = vadd.f32 0.0, %v500
        %v502 = vpop.f32.mrb[0].mxu0
        %v503 = vpop.f32.mrb[0].mxu0
        %v504 = vadd.f32 0.0, %v503
        %v505 = vpop.f32.mrb[0].mxu0
        %506 = vmatprep.mubr.bf16.mxu0 0
        %507 = vmatmul.mubr.bf16.gmra.mrb[0].mxu0 %v288
        %v508 = vpop.f32.mrb[0].mxu0
        %v509 = vadd.f32 0.0, %v508
        %v510 = vpop.f32.mrb[0].mxu0
        %v511 = vpop.f32.mrb[0].mxu0
        %v512 = vadd.f32 0.0, %v511
        %v513 = vpop.f32.mrb[0].mxu0
        %514 = vdwg.mxu0
        %vm515 = vcmask 31744
        %v516 = vsel %vm515, %v501, -inf
        %v517 = vsel %vm515, %v504, -inf
        %v518 = vmax.f32 %v516, %v517
        %v519 = vrot.slane %v518, 4
        %v520 = vmax.f32 %v518, %v519
        %v521 = vrot.slane %v520, 2
        %v522 = vmax.f32 %v520, %v521
        %v523 = vrot.slane %v522, 1
        %v524 = vmax.f32 %v522, %v523
        %v525 = vsel %vm515, %v509, -inf
        %v526 = vsel %vm515, %v512, -inf
        %v527 = vmax.f32 %v525, %v526
        %v528 = vrot.slane %v527, 4
        %v529 = vmax.f32 %v527, %v528
        %v530 = vrot.slane %v529, 2
        %v531 = vmax.f32 %v529, %v530
        %v532 = vrot.slane %v531, 1
        %v533 = vmax.f32 %v531, %v532
        %v534 = vsub.f32 %v501, %v524
        %v535 = vsub.f32 %v504, %v524
        %v536 = vsub.f32 %v509, %v533
        %v537 = vsub.f32 %v512, %v533
        %v538 = vmul.f32 %v534, 1.442695
        %v539 = vpow.pop %v538
        %v540 = vmul.f32 %v535, 1.442695
        %v541 = vpow.pop %v540
        %v542 = vmul.f32 %v536, 1.442695
        %v543 = vpow.pop %v542
        %v544 = vmul.f32 %v537, 1.442695
        %v545 = vpow.pop %v544
        %v546 = vsel %vm515, %v539, 0.0
        %v547 = vsel %vm515, %v541, 0.0
        %v548 = vadd.f32 %v546, %v547
        %v549 = vrot.slane %v548, 4
        %v550 = vadd.f32 %v548, %v549
        %v551 = vrot.slane %v550, 2
        %v552 = vadd.f32 %v550, %v551
        %v553 = vrot.slane %v552, 1
        %v554 = vadd.f32 %v552, %v553
        %v555 = vsel %vm515, %v543, 0.0
        %v556 = vsel %vm515, %v545, 0.0
        %v557 = vadd.f32 %v555, %v556
        %v558 = vrot.slane %v557, 4
        %v559 = vadd.f32 %v557, %v558
        %v560 = vrot.slane %v559, 2
        %v561 = vadd.f32 %v559, %v560
        %v562 = vrot.slane %v561, 1
        %v563 = vadd.f32 %v561, %v562
        %v564 = vrcp.pop %v554
        %v565 = vrcp.pop %v563
        %v566 = vmul.f32 %v539, %v564
        %v567 = vmul.f32 %v541, %v564
        %v568 = vmul.f32 %v543, %v565
        %v569 = vmul.f32 %v545, %v565
        %v570 = vpack.c.bf16 %v567, %v566
        %v571 = vpack.c.bf16 %v569, %v568
        %v572 = vld [vmem:[%s3] sm:$0x3]
        %v574 = vsel %vm515, %v570, 0
        %v577 = vsel %vm515, %v571, 0
        %vm579 = vcmask 1041408
        %v581 = vsel %vm579, %v572, 0
        %583 = vmatprep.subr.bf16.mxu0 0
        %584 = vmatpush1.bf16.msra.mxu0 %v581
        %585 = vmatprep.subr.bf16.mxu0 0
        %586 = vmatpush1.bf16.msra.mxu0 0
        %587 = vmatprep.subr.bf16.mxu0 0
        %588 = vmatpush1.bf16.msra.mxu0 0
        %589 = vmatprep.subr.bf16.mxu0 0
        %590 = vmatpush1.bf16.msra.mxu0 0
        %591 = vmatprep.subr.bf16.mxu0 0
        %592 = vmatpush1.bf16.msra.mxu0 0
        %593 = vmatprep.subr.bf16.mxu0 0
        %594 = vmatpush1.bf16.msra.mxu0 0
        %595 = vmatprep.subr.bf16.mxu0 0
        %596 = vmatpush1.bf16.msra.mxu0 0
        %597 = vmatprep.subr.bf16.mxu0 0
        %598 = vmatpush1.bf16.msra.mxu0 0
        %599 = vmatprep.subr.bf16.mxu0 0
        %600 = vmatpush1.bf16.msra.mxu0 0
        %601 = vmatprep.subr.bf16.mxu0 0
        %602 = vmatpush1.bf16.msra.mxu0 0
        %603 = vmatprep.subr.bf16.mxu0 0
        %604 = vmatpush1.bf16.msra.mxu0 0
        %605 = vmatprep.subr.bf16.mxu0 0
        %606 = vmatpush1.bf16.msra.mxu0 0
        %607 = vmatprep.subr.bf16.mxu0 0
        %608 = vmatpush1.bf16.msra.mxu0 0
        %609 = vmatprep.subr.bf16.mxu0 0
        %610 = vmatpush1.bf16.msra.mxu0 0
        %611 = vmatprep.subr.bf16.mxu0 0
        %612 = vmatpush1.bf16.msra.mxu0 0
        %613 = vmatprep.subr.bf16.mxu0 0
        %614 = vmatpush1.bf16.msra.mxu0 0
        %615 = vmatprep.mubr.bf16.mxu0 0
        %616 = vmatmul.mubr.bf16.gmra.mrb[0].mxu0 %v574
        %v617 = vpop.f32.mrb[0].mxu0
        %v618 = vadd.f32 0.0, %v617
        %v619 = vpop.f32.mrb[0].mxu0
        %v620 = vpop.f32.mrb[0].mxu0
        %v621 = vadd.f32 0.0, %v620
        %v622 = vpop.f32.mrb[0].mxu0
        %623 = vmatprep.mubr.bf16.mxu0 0
        %624 = vmatmul.mubr.bf16.gmra.mrb[0].mxu0 %v577
        %v625 = vpop.f32.mrb[0].mxu0
        %v626 = vadd.f32 0.0, %v625
        %v627 = vpop.f32.mrb[0].mxu0
        %v628 = vpop.f32.mrb[0].mxu0
        %v629 = vadd.f32 0.0, %v628
        %v630 = vpop.f32.mrb[0].mxu0
        %631 = vdwg.mxu0
        %v632 = vld [vmem:[%s4] sm:$0x1]
        %v633 = vmul.f32 %v618, %v388
        %v634 = vmul.f32 %v621, %v391
        %v635 = vmul.f32 %v626, %v396
        %v636 = vmul.f32 %v629, %v399
        %v637 = vpack.c.bf16 %v634, %v633
        %v638 = vpack.c.bf16 %v636, %v635
        %vm639 = vcmask 261120
        %v641 = vsel %vm639, %v632, 0
        %643 = vmatprep.subr.bf16.mxu0 0
        %644 = vmatpush1.bf16.msra.mxu0 %v637
        %645 = vmatprep.subr.bf16.mxu0 0
        %646 = vmatpush1.bf16.msra.mxu0 %v638
        %647 = vmatprep.subr.bf16.mxu0 0
        %648 = vmatpush1.bf16.msra.mxu0 0
        %649 = vmatprep.subr.bf16.mxu0 0
        %650 = vmatpush1.bf16.msra.mxu0 0
        %651 = vmatprep.subr.bf16.mxu0 0
        %652 = vmatpush1.bf16.msra.mxu0 0
        %653 = vmatprep.subr.bf16.mxu0 0
        %654 = vmatpush1.bf16.msra.mxu0 0
        %655 = vmatprep.subr.bf16.mxu0 0
        %656 = vmatpush1.bf16.msra.mxu0 0
        %657 = vmatprep.subr.bf16.mxu0 0
        %658 = vmatpush1.bf16.msra.mxu0 0
        %659 = vmatprep.subr.bf16.mxu0 0
        %660 = vmatpush1.bf16.msra.mxu0 0
        %661 = vmatprep.subr.bf16.mxu0 0
        %662 = vmatpush1.bf16.msra.mxu0 0
        %663 = vmatprep.subr.bf16.mxu0 0
        %664 = vmatpush1.bf16.msra.mxu0 0
        %665 = vmatprep.subr.bf16.mxu0 0
        %666 = vmatpush1.bf16.msra.mxu0 0
        %667 = vmatprep.subr.bf16.mxu0 0
        %668 = vmatpush1.bf16.msra.mxu0 0
        %669 = vmatprep.subr.bf16.mxu0 0
        %670 = vmatpush1.bf16.msra.mxu0 0
        %671 = vmatprep.subr.bf16.mxu0 0
        %672 = vmatpush1.bf16.msra.mxu0 0
        %673 = vmatprep.subr.bf16.mxu0 0
        %674 = vmatpush1.bf16.msra.mxu0 0
        %675 = vmatprep.mubr.bf16.mxu0 0
        %676 = vmatmul.mubr.bf16.gmra.mrb[0].mxu0 %v641
        %v677 = vpop.f32.mrb[0].mxu0
        %v678 = vadd.f32 0.0, %v677
        %v679 = vpop.f32.mrb[0].mxu0
        %v680 = vpop.f32.mrb[0].mxu0
        %v681 = vpop.f32.mrb[0].mxu0
        %682 = vdwg.mxu0
        %v683 = vpack.c.bf16 %v678, %v678
        %v684 = vld [vmem:[%s5] sm:$0xf]
        %v685 = vld [vmem:[%s5 + $0x4] sm:$0xf]
        %v686 = vld [vmem:[%s5 + $0x8] sm:$0xf]
        %v687 = vld [vmem:[%s5 + $0xc] sm:$0xf]
        %v688 = vld [vmem:[%s5 + $0x10] sm:$0xf]
        %v689 = vld [vmem:[%s5 + $0x14] sm:$0xf]
        %v690 = vld [vmem:[%s5 + $0x18] sm:$0xf]
        %v691 = vld [vmem:[%s5 + $0x1c] sm:$0xf]
        %v692 = vld [vmem:[%s6] sm:$0x1]
        %v694 = vlaneseq
        %v695 = vshrl.u32 %v694, 7
        %v696 = vsub.s32 0, %v695
        %v697 = vrot.slane %v692, %v696
        %v707 = vunpack.c.l.b16 %v684
        %v708 = vunpack.c.l.b16 %v685
        %v709 = vunpack.c.l.b16 %v686
        %v710 = vunpack.c.l.b16 %v687
        %v711 = vunpack.c.l.b16 %v688
        %v712 = vunpack.c.l.b16 %v689
        %v713 = vunpack.c.l.b16 %v690
        %v714 = vunpack.c.l.b16 %v691
        %v715 = vpack.c.b16 %v708, %v707
        %v716 = vpack.c.b16 %v710, %v709
        %v717 = vpack.c.b16 %v712, %v711
        %v718 = vpack.c.b16 %v714, %v713
        %vm723 = vcmask 523264
        %v725 = vsel %vm723, %v683, 0
        %727 = vmatprep.subr.bf16.mxu0 0
        %728 = vmatpush1.bf16.msra.mxu0 %v715
        %729 = vmatprep.subr.bf16.mxu0 0
        %730 = vmatpush1.bf16.msra.mxu0 %v716
        %731 = vmatprep.subr.bf16.mxu0 0
        %732 = vmatpush1.bf16.msra.mxu0 %v717
        %733 = vmatprep.subr.bf16.mxu0 0
        %734 = vmatpush1.bf16.msra.mxu0 %v718
        %735 = vmatprep.subr.bf16.mxu0 0
        %736 = vmatpush1.bf16.msra.mxu0 0
        %737 = vmatprep.subr.bf16.mxu0 0
        %738 = vmatpush1.bf16.msra.mxu0 0
        %739 = vmatprep.subr.bf16.mxu0 0
        %740 = vmatpush1.bf16.msra.mxu0 0
        %741 = vmatprep.subr.bf16.mxu0 0
        %742 = vmatpush1.bf16.msra.mxu0 0
        %743 = vmatprep.subr.bf16.mxu0 0
        %744 = vmatpush1.bf16.msra.mxu0 0
        %745 = vmatprep.subr.bf16.mxu0 0
        %746 = vmatpush1.bf16.msra.mxu0 0
        %747 = vmatprep.subr.bf16.mxu0 0
        %748 = vmatpush1.bf16.msra.mxu0 0
        %749 = vmatprep.subr.bf16.mxu0 0
        %750 = vmatpush1.bf16.msra.mxu0 0
        %751 = vmatprep.subr.bf16.mxu0 0
        %752 = vmatpush1.bf16.msra.mxu0 0
        %753 = vmatprep.subr.bf16.mxu0 0
        %754 = vmatpush1.bf16.msra.mxu0 0
        %755 = vmatprep.subr.bf16.mxu0 0
        %756 = vmatpush1.bf16.msra.mxu0 0
        %757 = vmatprep.subr.bf16.mxu0 0
        %758 = vmatpush1.bf16.msra.mxu0 0
        %759 = vmatprep.mubr.bf16.mxu0 0
        %760 = vmatmul.mubr.bf16.gmra.mrb[0].mxu0 %v725
        %v761 = vpop.f32.mrb[0].mxu0
        %v762 = vadd.f32 %v697, %v761
        %v763 = vpop.f32.mrb[0].mxu0
        %v764 = vpop.f32.mrb[0].mxu0
        %v765 = vpop.f32.mrb[0].mxu0
        %766 = vdwg.mxu0
        %vm767 = vcmask 254976
        %768 = vst.msk [vmem:[%s274] sm:$0x3] %vm767, %v762
        %s769 = sand.u32 %s181, 1
        %s770 = scalar_lea.sflag [#allocation3], %s769
        %s771 = sand.u32 %s181, 1
        %s772 = smul.addr %s771, 2
        %s773 = scalar_lea.vmem [#allocation2], %s772
        // Predicated region
        $region49: #{tpu_custom_call.1} parent=47 // pred_check
          %p774 = pneg %p191
        $region50: #{tpu_custom_call.1} parent=47 // pred_check_branch
          %776 = sbr.rel (%p774) target = $region52
        $region51: #{tpu_custom_call.1} parent=47 // pred_region
          %s778 = ssub.s32 32, 32
          %779 = vsyncadd %s770, %s778
          %s780 = smul.addr %s21, 32
          %s781 = scalar_lea.hbm %s7, %s780
          %s783 = sshll.u32 %s773, 4
          %s784 = int_to_ptr.vmem [resolvable:$true] %s783
          %786 = dma.vmem_to_hbm [thread:$0]  %s784, 32, %s781, %s770
        $region52: #{tpu_custom_call.1} parent=47 // pred_fallthru
          _
      $region48: #{tpu_custom_call.1} parent=5 // pred_fallthru
        _
      %p787 = scmp.le.s32.totalorder 2, %s16
      // Predicated region
      $region53: #{tpu_custom_call.1} parent=5 // pred_check
        %p788 = pneg %p787
      $region54: #{tpu_custom_call.1} parent=5 // pred_check_branch
        %790 = sbr.rel (%p788) target = $region56
      $region55: #{tpu_custom_call.1} parent=5 // pred_region
        %s791 = ssub.s32 %s16, 2
        // Predicated region
        $region57: #{tpu_custom_call.1} parent=55 // pred_check
          %p792 = pneg %p197
        $region58: #{tpu_custom_call.1} parent=55 // pred_check_branch
          %794 = sbr.rel (%p792) target = $region60
        $region59: #{tpu_custom_call.1} parent=55 // pred_region
          %s795 = sand.u32 %s182, 1
          %s796 = scalar_lea.sflag [#allocation3], %s795
          %s797 = sand.u32 %s182, 1
          %s798 = smul.addr %s797, 2
          %s799 = scalar_lea.vmem [#allocation2], %s798
          %800 = dma.done %s796, 32
        $region60: #{tpu_custom_call.1} parent=55 // pred_fallthru
          _
      $region56: #{tpu_custom_call.1} parent=5 // pred_fallthru
        _
    $region6: #{tpu_custom_call.1} parent=1 // loop_footer
      %s20 = sadd.s32 1, %s16
    $region7: #{tpu_custom_call.1} parent=1 // loop_footer_branch
      %15 = sbr.rel target = $region3
    $region8: #{tpu_custom_call.1} parent=1 // loop_exit
      _
    %801 = vsyncpa [#allocation3], 1
    %s802 = scalar_lea.sflag [#allocation3], 1
    %803 = vsyncpa %s802, 1

// kernel: tpu_custom_call.1
$region0: #{tpu_custom_call.1}
  #allocation0 [shape = 'u32[]', space=smem, size = 0x4, offset = 0x4, fixed_abs, tag = 'smem constant byte address 0x4 - core index']
  #allocation1 [shape = 'u32[144,128]{1,0:T(1,128)}', space=vmem, size = 0x12000, scoped, tag = 'internal scratch']
  %s0 = inlined_call_operand.vmem [shape: f32[4,16,128], index: 0, kind: input, shape index: {}]
  %s1 = inlined_call_operand.vmem [shape: bf16[128,4], index: 1, kind: input, shape index: {}]
  %s2 = inlined_call_operand.vmem [shape: bf16[128,64], index: 2, kind: input, shape index: {}]
  %s3 = inlined_call_operand.vmem [shape: bf16[4,64], index: 3, kind: input, shape index: {}]
  %s4 = inlined_call_operand.vmem [shape: bf16[2,32], index: 4, kind: input, shape index: {}]
  %s5 = inlined_call_operand.vmem [shape: bf16[64,32], index: 5, kind: input, shape index: {}]
  %s6 = inlined_call_operand.vmem [shape: f32[1,32], index: 6, kind: input, shape index: {}]
  %s7 = inlined_call_operand.hbm [shape: f32[2,2,32], index: 7, kind: output, shape index: {}]
  %s8 = sld [smem:[#allocation0]]
  $region61: #{tpu_custom_call.1} parent=0
    _
  %s10 = ssub.s32 1, %s8
  %s11 = scalar_select 0, %s10, %s8
  $region1: #{tpu_custom_call.1} parent=0
    #allocation2 [shape = 'u8[2048]{0}', space=vmem, size = 0x800, scoped, tag = 'output window, operand 0']
    #allocation3 [shape = 's32[2]{0}', space=sflag, size = 0x8, scoped, tag = 'scoped memory for tpu_custom_call.1']
    %12 = vsyncpa [#allocation3], 0
    %s13 = scalar_lea.sflag [#allocation3], 1
    %14 = vsyncpa %s13, 0
    loop: start=0, step=1, limit=4
    $region2: #{tpu_custom_call.1} parent=1 // loop_pre_header
      _
    $region3: #{tpu_custom_call.1} parent=1 // loop_header
      %s16 = sphi 0, %s20
      %p17 = scmp.ge.s32.totalorder %s16, 4
      %s26 = sphi 0, %s28
      %s29 = sphi 0, %s26
      %s30 = sphi 0, %s29
      %s46 = sphi 0, %s30
      %s50 = sphi 0, %s50
      %s52 = sphi 0, %s50
      %s53 = sphi 0, %s52
      %s67 = sphi 0, %s53
      %s71 = sphi 0, %s71
      %s73 = sphi 0, %s71
      %s74 = sphi 0, %s73
      %s88 = sphi 0, %s74
      %s92 = sphi 0, %s92
      %s94 = sphi 0, %s92
      %s95 = sphi 0, %s94
      %s109 = sphi 0, %s95
      %s113 = sphi 0, %s113
      %s115 = sphi 0, %s113
      %s116 = sphi 0, %s115
      %s130 = sphi 0, %s116
      %s134 = sphi 0, %s134
      %s136 = sphi 0, %s134
      %s137 = sphi 0, %s136
      %s151 = sphi 0, %s137
      %s155 = sphi 0, %s155
      %s157 = sphi 0, %s155
      %s158 = sphi 0, %s157
      %s172 = sphi 0, %s158
      %s178 = sphi 0, %s180
      %s181 = sphi 0, %s178
      %s182 = sphi 0, %s181
      %s198 = sphi 0, %s182
    $region4: #{tpu_custom_call.1} parent=1 // loop_header_branch
      %19 = sbr.rel (%p17) target = $region8
    $region5: #{tpu_custom_call.1} parent=1 // loop_body
      %s21 = ssub.s32 %s16, 1
      %s22 = ssub.s32 %s16, 2
      %s23 = sadd.s32 %s16, 1
      %s24 = ssub.s32 %s16, %s23
      %p25 = scmp.eq.s32.totalorder %s24, 0
      %s27 = sadd.s32 %s26, 1
      %s28 = scalar_select %p25, %s26, %s27
      %p31 = pneg %p25
      %p32 = scmp.eq.s32.totalorder %s16, 1
      %p33 = por %p31, %p32
      %p34 = scmp.ne.s32.totalorder %s26, %s29
      %p35 = scmp.eq.s32.totalorder %s16, 0
      %p36 = por %p34, %p35
      %p37 = scmp.ne.s32.totalorder %s26, %s29
      %p38 = scmp.eq.s32.totalorder %s21, 1
      %p39 = por %p37, %p38
      %p40 = scmp.ne.s32.totalorder %s29, %s30
      %p41 = scmp.eq.s32.totalorder %s21, 0
      %p42 = por %p40, %p41
      %p43 = scmp.ne.s32.totalorder %s29, %s30
      %p44 = scmp.eq.s32.totalorder %s22, 1
      %p45 = por %p43, %p44
      %p47 = scmp.ne.s32.totalorder %s30, %s46
      %p48 = scmp.eq.s32.totalorder %s22, 0
      %p49 = por %p47, %p48
      %s51 = sadd.s32 %s50, 1
      %p54 = scmp.eq.s32.totalorder %s16, 1
      %p55 = scmp.ne.s32.totalorder %s50, %s52
      %p56 = scmp.eq.s32.totalorder %s16, 0
      %p57 = por %p55, %p56
      %p58 = scmp.ne.s32.totalorder %s50, %s52
      %p59 = scmp.eq.s32.totalorder %s21, 1
      %p60 = por %p58, %p59
      %p61 = scmp.ne.s32.totalorder %s52, %s53
      %p62 = scmp.eq.s32.totalorder %s21, 0
      %p63 = por %p61, %p62
      %p64 = scmp.ne.s32.totalorder %s52, %s53
      %p65 = scmp.eq.s32.totalorder %s22, 1
      %p66 = por %p64, %p65
      %p68 = scmp.ne.s32.totalorder %s53, %s67
      %p69 = scmp.eq.s32.totalorder %s22, 0
      %p70 = por %p68, %p69
      %s72 = sadd.s32 %s71, 1
      %p75 = scmp.eq.s32.totalorder %s16, 1
      %p76 = scmp.ne.s32.totalorder %s71, %s73
      %p77 = scmp.eq.s32.totalorder %s16, 0
      %p78 = por %p76, %p77
      %p79 = scmp.ne.s32.totalorder %s71, %s73
      %p80 = scmp.eq.s32.totalorder %s21, 1
      %p81 = por %p79, %p80
      %p82 = scmp.ne.s32.totalorder %s73, %s74
      %p83 = scmp.eq.s32.totalorder %s21, 0
      %p84 = por %p82, %p83
      %p85 = scmp.ne.s32.totalorder %s73, %s74
      %p86 = scmp.eq.s32.totalorder %s22, 1
      %p87 = por %p85, %p86
      %p89 = scmp.ne.s32.totalorder %s74, %s88
      %p90 = scmp.eq.s32.totalorder %s22, 0
      %p91 = por %p89, %p90
      %s93 = sadd.s32 %s92, 1
      %p96 = scmp.eq.s32.totalorder %s16, 1
      %p97 = scmp.ne.s32.totalorder %s92, %s94
      %p98 = scmp.eq.s32.totalorder %s16, 0
      %p99 = por %p97, %p98
      %p100 = scmp.ne.s32.totalorder %s92, %s94
      %p101 = scmp.eq.s32.totalorder %s21, 1
      %p102 = por %p100, %p101
      %p103 = scmp.ne.s32.totalorder %s94, %s95
      %p104 = scmp.eq.s32.totalorder %s21, 0
      %p105 = por %p103, %p104
      %p106 = scmp.ne.s32.totalorder %s94, %s95
      %p107 = scmp.eq.s32.totalorder %s22, 1
      %p108 = por %p106, %p107
      %p110 = scmp.ne.s32.totalorder %s95, %s109
      %p111 = scmp.eq.s32.totalorder %s22, 0
      %p112 = por %p110, %p111
      %s114 = sadd.s32 %s113, 1
      %p117 = scmp.eq.s32.totalorder %s16, 1
      %p118 = scmp.ne.s32.totalorder %s113, %s115
      %p119 = scmp.eq.s32.totalorder %s16, 0
      %p120 = por %p118, %p119
      %p121 = scmp.ne.s32.totalorder %s113, %s115
      %p122 = scmp.eq.s32.totalorder %s21, 1
      %p123 = por %p121, %p122
      %p124 = scmp.ne.s32.totalorder %s115, %s116
      %p125 = scmp.eq.s32.totalorder %s21, 0
      %p126 = por %p124, %p125
      %p127 = scmp.ne.s32.totalorder %s115, %s116
      %p128 = scmp.eq.s32.totalorder %s22, 1
      %p129 = por %p127, %p128
      %p131 = scmp.ne.s32.totalorder %s116, %s130
      %p132 = scmp.eq.s32.totalorder %s22, 0
      %p133 = por %p131, %p132
      %s135 = sadd.s32 %s134, 1
      %p138 = scmp.eq.s32.totalorder %s16, 1
      %p139 = scmp.ne.s32.totalorder %s134, %s136
      %p140 = scmp.eq.s32.totalorder %s16, 0
      %p141 = por %p139, %p140
      %p142 = scmp.ne.s32.totalorder %s134, %s136
      %p143 = scmp.eq.s32.totalorder %s21, 1
      %p144 = por %p142, %p143
      %p145 = scmp.ne.s32.totalorder %s136, %s137
      %p146 = scmp.eq.s32.totalorder %s21, 0
      %p147 = por %p145, %p146
      %p148 = scmp.ne.s32.totalorder %s136, %s137
      %p149 = scmp.eq.s32.totalorder %s22, 1
      %p150 = por %p148, %p149
      %p152 = scmp.ne.s32.totalorder %s137, %s151
      %p153 = scmp.eq.s32.totalorder %s22, 0
      %p154 = por %p152, %p153
      %s156 = sadd.s32 %s155, 1
      %p159 = scmp.eq.s32.totalorder %s16, 1
      %p160 = scmp.ne.s32.totalorder %s155, %s157
      %p161 = scmp.eq.s32.totalorder %s16, 0
      %p162 = por %p160, %p161
      %p163 = scmp.ne.s32.totalorder %s155, %s157
      %p164 = scmp.eq.s32.totalorder %s21, 1
      %p165 = por %p163, %p164
      %p166 = scmp.ne.s32.totalorder %s157, %s158
      %p167 = scmp.eq.s32.totalorder %s21, 0
      %p168 = por %p166, %p167
      %p169 = scmp.ne.s32.totalorder %s157, %s158
      %p170 = scmp.eq.s32.totalorder %s22, 1
      %p171 = por %p169, %p170
      %p173 = scmp.ne.s32.totalorder %s158, %s172
      %p174 = scmp.eq.s32.totalorder %s22, 0
      %p175 = por %p173, %p174
      %s176 = ssub.s32 %s16, %s23
      %p177 = scmp.eq.s32.totalorder %s176, 0
      %s179 = sadd.s32 %s178, 1
      %s180 = scalar_select %p177, %s178, %s179
      %p183 = pneg %p177
      %p184 = scmp.eq.s32.totalorder %s16, 1
      %p185 = por %p183, %p184
      %p186 = scmp.ne.s32.totalorder %s178, %s181
      %p187 = scmp.eq.s32.totalorder %s16, 0
      %p188 = por %p186, %p187
      %p189 = scmp.ne.s32.totalorder %s178, %s181
      %p190 = scmp.eq.s32.totalorder %s21, 1
      %p191 = por %p189, %p190
      %p192 = scmp.ne.s32.totalorder %s181, %s182
      %p193 = scmp.eq.s32.totalorder %s21, 0
      %p194 = por %p192, %p193
      %p195 = scmp.ne.s32.totalorder %s181, %s182
      %p196 = scmp.eq.s32.totalorder %s22, 1
      %p197 = por %p195, %p196
      %p199 = scmp.ne.s32.totalorder %s182, %s198
      %p200 = scmp.eq.s32.totalorder %s22, 0
      %p201 = por %p199, %p200
      %p202 = scmp.le.s32.totalorder 1, %s16
      %p203 = scmp.lt.s32.totalorder %s16, 3
      %p204 = pnand %p202, %p203
      %p205 = pneg %p204
      // Predicated region
      $region9: #{tpu_custom_call.1} parent=5 // pred_check
        _
      $region10: #{tpu_custom_call.1} parent=5 // pred_check_branch
        %207 = sbr.rel (%p204) target = $region12
      $region11: #{tpu_custom_call.1} parent=5 // pred_region
        %s208 = ssub.s32 %s16, 1
        // Predicated region
        $region13: #{tpu_custom_call.1} parent=11 // pred_check
          %p209 = pneg %p63
        $region14: #{tpu_custom_call.1} parent=11 // pred_check_branch
          %211 = sbr.rel (%p209) target = $region16
        $region15: #{tpu_custom_call.1} parent=11 // pred_region
          _
        $region16: #{tpu_custom_call.1} parent=11 // pred_fallthru
          _
        // Predicated region
        $region17: #{tpu_custom_call.1} parent=11 // pred_check
          %p212 = pneg %p84
        $region18: #{tpu_custom_call.1} parent=11 // pred_check_branch
          %214 = sbr.rel (%p212) target = $region20
        $region19: #{tpu_custom_call.1} parent=11 // pred_region
          _
        $region20: #{tpu_custom_call.1} parent=11 // pred_fallthru
          _
        // Predicated region
        $region21: #{tpu_custom_call.1} parent=11 // pred_check
          %p215 = pneg %p105
        $region22: #{tpu_custom_call.1} parent=11 // pred_check_branch
          %217 = sbr.rel (%p215) target = $region24
        $region23: #{tpu_custom_call.1} parent=11 // pred_region
          _
        $region24: #{tpu_custom_call.1} parent=11 // pred_fallthru
          _
        // Predicated region
        $region25: #{tpu_custom_call.1} parent=11 // pred_check
          %p218 = pneg %p126
        $region26: #{tpu_custom_call.1} parent=11 // pred_check_branch
          %220 = sbr.rel (%p218) target = $region28
        $region27: #{tpu_custom_call.1} parent=11 // pred_region
          _
        $region28: #{tpu_custom_call.1} parent=11 // pred_fallthru
          _
        // Predicated region
        $region29: #{tpu_custom_call.1} parent=11 // pred_check
          %p221 = pneg %p147
        $region30: #{tpu_custom_call.1} parent=11 // pred_check_branch
          %223 = sbr.rel (%p221) target = $region32
        $region31: #{tpu_custom_call.1} parent=11 // pred_region
          _
        $region32: #{tpu_custom_call.1} parent=11 // pred_fallthru
          _
        // Predicated region
        $region33: #{tpu_custom_call.1} parent=11 // pred_check
          %p224 = pneg %p168
        $region34: #{tpu_custom_call.1} parent=11 // pred_check_branch
          %226 = sbr.rel (%p224) target = $region36
        $region35: #{tpu_custom_call.1} parent=11 // pred_region
          _
        $region36: #{tpu_custom_call.1} parent=11 // pred_fallthru
          _
      $region12: #{tpu_custom_call.1} parent=5 // pred_fallthru
        _
      %p227 = scmp.lt.s32.totalorder %s16, 2
      // Predicated region
      $region37: #{tpu_custom_call.1} parent=5 // pred_check
        %p228 = pneg %p227
      $region38: #{tpu_custom_call.1} parent=5 // pred_check_branch
        %230 = sbr.rel (%p228) target = $region40
      $region39: #{tpu_custom_call.1} parent=5 // pred_region
        // Predicated region
        $region41: #{tpu_custom_call.1} parent=39 // pred_check
          %p231 = pneg %p36
        $region42: #{tpu_custom_call.1} parent=39 // pred_check_branch
          %233 = sbr.rel (%p231) target = $region44
        $region43: #{tpu_custom_call.1} parent=39 // pred_region
          %s234 = smul.u32 2, %s16
          %p235 = scmp.lt.s32.totalorder %s234, 3
          %s236 = scalar_select %p235, %s234, 3
          %s237 = smul.addr %s236, 2
          %s238 = smul.addr %s237, 8
          %s239 = scalar_lea.vmem %s0, %s238
          %s240 = smul.u32 2, %s16
        $region44: #{tpu_custom_call.1} parent=39 // pred_fallthru
          _
      $region40: #{tpu_custom_call.1} parent=5 // pred_fallthru
        _
      %p241 = scmp.le.s32.totalorder 1, %s16
      %p242 = scmp.lt.s32.totalorder %s16, 3
      %p243 = pnand %p241, %p242
      %p244 = pneg %p243
      // Predicated region
      $region45: #{tpu_custom_call.1} parent=5 // pred_check
        _
      $region46: #{tpu_custom_call.1} parent=5 // pred_check_branch
        %246 = sbr.rel (%p243) target = $region48
      $region47: #{tpu_custom_call.1} parent=5 // pred_region
        %s247 = ssub.s32 %s16, 1
        %s248 = smul.u32 2, %s21
        %p249 = scmp.lt.s32.totalorder %s248, 3
        %s250 = scalar_select %p249, %s248, 3
        %s251 = smul.addr %s250, 2
        %s252 = smul.addr %s251, 8
        %s253 = scalar_lea.vmem %s0, %s252
        %p254 = pneg %p42
        %p255 = pneg %p39
        %p256 = pneg %p63
        %p257 = pneg %p60
        %p258 = pneg %p84
        %p259 = pneg %p81
        %p260 = pneg %p105
        %p261 = pneg %p102
        %p262 = pneg %p126
        %p263 = pneg %p123
        %p264 = pneg %p147
        %p265 = pneg %p144
        %p266 = pneg %p168
        %p267 = pneg %p165
        %p268 = pneg %p194
        %p269 = pneg %p191
        %s270 = sand.u32 %s181, 1
        %s271 = scalar_lea.sflag [#allocation3], %s270
        %s272 = sand.u32 %s181, 1
        %s273 = smul.addr %s272, 2
        %s274 = scalar_lea.vmem [#allocation2], %s273
        %s275 = smul.u32 2, %s21
        %p276 = scmp.lt.s32.totalorder %s275, 3
        %s277 = scalar_select %p276, %s275, 3
        %s278 = smul.addr %s277, 2
        %s279 = smul.addr %s278, 8
        %s280 = scalar_lea.vmem %s0, %s279
        %s281 = smul.u32 2, %s21
        %v283 = vld [vmem:[%s280] sm:$0xff]
        %v284 = vld [vmem:[%s280 + $0x8] sm:$0xff]
        %v285 = vld [vmem:[%s280 + $0x10] sm:$0xff]
        %v286 = vld [vmem:[%s280 + $0x18] sm:$0xff]
        %v287 = vpack.c.bf16 %v284, %v283
        %v288 = vpack.c.bf16 %v286, %v285
        %v289 = vld [vmem:[%s2] sm:$0xf]
        %v290 = vld [vmem:[%s2 + $0x4] sm:$0xf]
        %v291 = vld [vmem:[%s2 + $0x8] sm:$0xf]
        %v292 = vld [vmem:[%s2 + $0xc] sm:$0xf]
        %v293 = vld [vmem:[%s2 + $0x10] sm:$0xf]
        %v294 = vld [vmem:[%s2 + $0x14] sm:$0xf]
        %v295 = vld [vmem:[%s2 + $0x18] sm:$0xf]
        %v296 = vld [vmem:[%s2 + $0x1c] sm:$0xf]
        %v297 = vld [vmem:[%s2 + $0x20] sm:$0xf]
        %v298 = vld [vmem:[%s2 + $0x24] sm:$0xf]
        %v299 = vld [vmem:[%s2 + $0x28] sm:$0xf]
        %v300 = vld [vmem:[%s2 + $0x2c] sm:$0xf]
        %v301 = vld [vmem:[%s2 + $0x30] sm:$0xf]
        %v302 = vld [vmem:[%s2 + $0x34] sm:$0xf]
        %v303 = vld [vmem:[%s2 + $0x38] sm:$0xf]
        %v304 = vld [vmem:[%s2 + $0x3c] sm:$0xf]
        %v321 = vunpack.c.l.b16 %v289
        %v322 = vunpack.c.l.b16 %v290
        %v323 = vunpack.c.l.b16 %v291
        %v324 = vunpack.c.l.b16 %v292
        %v325 = vunpack.c.l.b16 %v293
        %v326 = vunpack.c.l.b16 %v294
        %v327 = vunpack.c.l.b16 %v295
        %v328 = vunpack.c.l.b16 %v296
        %v329 = vunpack.c.l.b16 %v297
        %v330 = vunpack.c.l.b16 %v298
        %v331 = vunpack.c.l.b16 %v299
        %v332 = vunpack.c.l.b16 %v300
        %v333 = vunpack.c.l.b16 %v301
        %v334 = vunpack.c.l.b16 %v302
        %v335 = vunpack.c.l.b16 %v303
        %v336 = vunpack.c.l.b16 %v304
        %v337 = vpack.c.b16 %v322, %v321
        %v338 = vpack.c.b16 %v324, %v323
        %v339 = vpack.c.b16 %v326, %v325
        %v340 = vpack.c.b16 %v328, %v327
        %v341 = vpack.c.b16 %v330, %v329
        %v342 = vpack.c.b16 %v332, %v331
        %v343 = vpack.c.b16 %v334, %v333
        %v344 = vpack.c.b16 %v336, %v335
        %353 = vmatprep.subr.bf16.mxu0 0
        %354 = vmatpush1.bf16.msra.mxu0 %v337
        %355 = vmatprep.subr.bf16.mxu0 0
        %356 = vmatpush1.bf16.msra.mxu0 %v338
        %357 = vmatprep.subr.bf16.mxu0 0
        %358 = vmatpush1.bf16.msra.mxu0 %v339
        %359 = vmatprep.subr.bf16.mxu0 0
        %360 = vmatpush1.bf16.msra.mxu0 %v340
        %361 = vmatprep.subr.bf16.mxu0 0
        %362 = vmatpush1.bf16.msra.mxu0 %v341
        %363 = vmatprep.subr.bf16.mxu0 0
        %364 = vmatpush1.bf16.msra.mxu0 %v342
        %365 = vmatprep.subr.bf16.mxu0 0
        %366 = vmatpush1.bf16.msra.mxu0 %v343
        %367 = vmatprep.subr.bf16.mxu0 0
        %368 = vmatpush1.bf16.msra.mxu0 %v344
        %369 = vmatprep.subr.bf16.mxu0 0
        %370 = vmatpush1.bf16.msra.mxu0 0
        %371 = vmatprep.subr.bf16.mxu0 0
        %372 = vmatpush1.bf16.msra.mxu0 0
        %373 = vmatprep.subr.bf16.mxu0 0
        %374 = vmatpush1.bf16.msra.mxu0 0
        %375 = vmatprep.subr.bf16.mxu0 0
        %376 = vmatpush1.bf16.msra.mxu0 0
        %377 = vmatprep.subr.bf16.mxu0 0
        %378 = vmatpush1.bf16.msra.mxu0 0
        %379 = vmatprep.subr.bf16.mxu0 0
        %380 = vmatpush1.bf16.msra.mxu0 0
        %381 = vmatprep.subr.bf16.mxu0 0
        %382 = vmatpush1.bf16.msra.mxu0 0
        %383 = vmatprep.subr.bf16.mxu0 0
        %384 = vmatpush1.bf16.msra.mxu0 0
        %385 = vmatprep.mubr.bf16.mxu0 0
        %386 = vmatmul.mubr.bf16.gmra.mrb[0].mxu0 %v287
        %v387 = vpop.f32.mrb[0].mxu0
        %v388 = vadd.f32 0.0, %v387
        %v389 = vpop.f32.mrb[0].mxu0
        %v390 = vpop.f32.mrb[0].mxu0
        %v391 = vadd.f32 0.0, %v390
        %v392 = vpop.f32.mrb[0].mxu0
        %393 = vmatprep.mubr.bf16.mxu0 0
        %394 = vmatmul.mubr.bf16.gmra.mrb[0].mxu0 %v288
        %v395 = vpop.f32.mrb[0].mxu0
        %v396 = vadd.f32 0.0, %v395
        %v397 = vpop.f32.mrb[0].mxu0
        %v398 = vpop.f32.mrb[0].mxu0
        %v399 = vadd.f32 0.0, %v398
        %v400 = vpop.f32.mrb[0].mxu0
        %401 = vdwg.mxu0
        %v402 = vld [vmem:[%s1] sm:$0xf]
        %v403 = vld [vmem:[%s1 + $0x4] sm:$0xf]
        %v404 = vld [vmem:[%s1 + $0x8] sm:$0xf]
        %v405 = vld [vmem:[%s1 + $0xc] sm:$0xf]
        %v406 = vld [vmem:[%s1 + $0x10] sm:$0xf]
        %v407 = vld [vmem:[%s1 + $0x14] sm:$0xf]
        %v408 = vld [vmem:[%s1 + $0x18] sm:$0xf]
        %v409 = vld [vmem:[%s1 + $0x1c] sm:$0xf]
        %v410 = vld [vmem:[%s1 + $0x20] sm:$0xf]
        %v411 = vld [vmem:[%s1 + $0x24] sm:$0xf]
        %v412 = vld [vmem:[%s1 + $0x28] sm:$0xf]
        %v413 = vld [vmem:[%s1 + $0x2c] sm:$0xf]
        %v414 = vld [vmem:[%s1 + $0x30] sm:$0xf]
        %v415 = vld [vmem:[%s1 + $0x34] sm:$0xf]
        %v416 = vld [vmem:[%s1 + $0x38] sm:$0xf]
        %v417 = vld [vmem:[%s1 + $0x3c] sm:$0xf]
        %v434 = vunpack.c.l.b16 %v402
        %v435 = vunpack.c.l.b16 %v403
        %v436 = vunpack.c.l.b16 %v404
        %v437 = vunpack.c.l.b16 %v405
        %v438 = vunpack.c.l.b16 %v406
        %v439 = vunpack.c.l.b16 %v407
        %v440 = vunpack.c.l.b16 %v408
        %v441 = vunpack.c.l.b16 %v409
        %v442 = vunpack.c.l.b16 %v410
        %v443 = vunpack.c.l.b16 %v411
        %v444 = vunpack.c.l.b16 %v412
        %v445 = vunpack.c.l.b16 %v413
        %v446 = vunpack.c.l.b16 %v414
        %v447 = vunpack.c.l.b16 %v415
        %v448 = vunpack.c.l.b16 %v416
        %v449 = vunpack.c.l.b16 %v417
        %v450 = vpack.c.b16 %v435, %v434
        %v451 = vpack.c.b16 %v437, %v436
        %v452 = vpack.c.b16 %v439, %v438
        %v453 = vpack.c.b16 %v441, %v440
        %v454 = vpack.c.b16 %v443, %v442
        %v455 = vpack.c.b16 %v445, %v444
        %v456 = vpack.c.b16 %v447, %v446
        %v457 = vpack.c.b16 %v449, %v448
        %466 = vmatprep.subr.bf16.mxu0 0
        %467 = vmatpush1.bf16.msra.mxu0 %v450
        %468 = vmatprep.subr.bf16.mxu0 0
        %469 = vmatpush1.bf16.msra.mxu0 %v451
        %470 = vmatprep.subr.bf16.mxu0 0
        %471 = vmatpush1.bf16.msra.mxu0 %v452
        %472 = vmatprep.subr.bf16.mxu0 0
        %473 = vmatpush1.bf16.msra.mxu0 %v453
        %474 = vmatprep.subr.bf16.mxu0 0
        %475 = vmatpush1.bf16.msra.mxu0 %v454
        %476 = vmatprep.subr.bf16.mxu0 0
        %477 = vmatpush1.bf16.msra.mxu0 %v455
        %478 = vmatprep.subr.bf16.mxu0 0
        %479 = vmatpush1.bf16.msra.mxu0 %v456
        %480 = vmatprep.subr.bf16.mxu0 0
        %481 = vmatpush1.bf16.msra.mxu0 %v457
        %482 = vmatprep.subr.bf16.mxu0 0
        %483 = vmatpush1.bf16.msra.mxu0 0
        %484 = vmatprep.subr.bf16.mxu0 0
        %485 = vmatpush1.bf16.msra.mxu0 0
        %486 = vmatprep.subr.bf16.mxu0 0
        %487 = vmatpush1.bf16.msra.mxu0 0
        %488 = vmatprep.subr.bf16.mxu0 0
        %489 = vmatpush1.bf16.msra.mxu0 0
        %490 = vmatprep.subr.bf16.mxu0 0
        %491 = vmatpush1.bf16.msra.mxu0 0
        %492 = vmatprep.subr.bf16.mxu0 0
        %493 = vmatpush1.bf16.msra.mxu0 0
        %494 = vmatprep.subr.bf16.mxu0 0
        %495 = vmatpush1.bf16.msra.mxu0 0
        %496 = vmatprep.subr.bf16.mxu0 0
        %497 = vmatpush1.bf16.msra.mxu0 0
        %498 = vmatprep.mubr.bf16.mxu0 0
        %499 = vmatmul.mubr.bf16.gmra.mrb[0].mxu0 %v287
        %v500 = vpop.f32.mrb[0].mxu0
        %v501 = vadd.f32 0.0, %v500
        %v502 = vpop.f32.mrb[0].mxu0
        %v503 = vpop.f32.mrb[0].mxu0
        %v504 = vadd.f32 0.0, %v503
        %v505 = vpop.f32.mrb[0].mxu0
        %506 = vmatprep.mubr.bf16.mxu0 0
        %507 = vmatmul.mubr.bf16.gmra.mrb[0].mxu0 %v288
        %v508 = vpop.f32.mrb[0].mxu0
        %v509 = vadd.f32 0.0, %v508
        %v510 = vpop.f32.mrb[0].mxu0
        %v511 = vpop.f32.mrb[0].mxu0
        %v512 = vadd.f32 0.0, %v511
        %v513 = vpop.f32.mrb[0].mxu0
        %514 = vdwg.mxu0
        %vm515 = vcmask 31744
        %v516 = vsel %vm515, %v501, -inf
        %v517 = vsel %vm515, %v504, -inf
        %v518 = vmax.f32 %v516, %v517
        %v519 = vrot.slane %v518, 4
        %v520 = vmax.f32 %v518, %v519
        %v521 = vrot.slane %v520, 2
        %v522 = vmax.f32 %v520, %v521
        %v523 = vrot.slane %v522, 1
        %v524 = vmax.f32 %v522, %v523
        %v525 = vsel %vm515, %v509, -inf
        %v526 = vsel %vm515, %v512, -inf
        %v527 = vmax.f32 %v525, %v526
        %v528 = vrot.slane %v527, 4
        %v529 = vmax.f32 %v527, %v528
        %v530 = vrot.slane %v529, 2
        %v531 = vmax.f32 %v529, %v530
        %v532 = vrot.slane %v531, 1
        %v533 = vmax.f32 %v531, %v532
        %v534 = vsub.f32 %v501, %v524
        %v535 = vsub.f32 %v504, %v524
        %v536 = vsub.f32 %v509, %v533
        %v537 = vsub.f32 %v512, %v533
        %v538 = vmul.f32 %v534, 1.442695
        %v539 = vpow.pop %v538
        %v540 = vmul.f32 %v535, 1.442695
        %v541 = vpow.pop %v540
        %v542 = vmul.f32 %v536, 1.442695
        %v543 = vpow.pop %v542
        %v544 = vmul.f32 %v537, 1.442695
        %v545 = vpow.pop %v544
        %v546 = vsel %vm515, %v539, 0.0
        %v547 = vsel %vm515, %v541, 0.0
        %v548 = vadd.f32 %v546, %v547
        %v549 = vrot.slane %v548, 4
        %v550 = vadd.f32 %v548, %v549
        %v551 = vrot.slane %v550, 2
        %v552 = vadd.f32 %v550, %v551
        %v553 = vrot.slane %v552, 1
        %v554 = vadd.f32 %v552, %v553
        %v555 = vsel %vm515, %v543, 0.0
        %v556 = vsel %vm515, %v545, 0.0
        %v557 = vadd.f32 %v555, %v556
        %v558 = vrot.slane %v557, 4
        %v559 = vadd.f32 %v557, %v558
        %v560 = vrot.slane %v559, 2
        %v561 = vadd.f32 %v559, %v560
        %v562 = vrot.slane %v561, 1
        %v563 = vadd.f32 %v561, %v562
        %v564 = vrcp.pop %v554
        %v565 = vrcp.pop %v563
        %v566 = vmul.f32 %v539, %v564
        %v567 = vmul.f32 %v541, %v564
        %v568 = vmul.f32 %v543, %v565
        %v569 = vmul.f32 %v545, %v565
        %v570 = vpack.c.bf16 %v567, %v566
        %v571 = vpack.c.bf16 %v569, %v568
        %v572 = vld [vmem:[%s3] sm:$0x3]
        %v574 = vsel %vm515, %v570, 0
        %v577 = vsel %vm515, %v571, 0
        %vm579 = vcmask 1041408
        %v581 = vsel %vm579, %v572, 0
        %583 = vmatprep.subr.bf16.mxu0 0
        %584 = vmatpush1.bf16.msra.mxu0 %v581
        %585 = vmatprep.subr.bf16.mxu0 0
        %586 = vmatpush1.bf16.msra.mxu0 0
        %587 = vmatprep.subr.bf16.mxu0 0
        %588 = vmatpush1.bf16.msra.mxu0 0
        %589 = vmatprep.subr.bf16.mxu0 0
        %590 = vmatpush1.bf16.msra.mxu0 0
        %591 = vmatprep.subr.bf16.mxu0 0
        %592 = vmatpush1.bf16.msra.mxu0 0
        %593 = vmatprep.subr.bf16.mxu0 0
        %594 = vmatpush1.bf16.msra.mxu0 0
        %595 = vmatprep.subr.bf16.mxu0 0
        %596 = vmatpush1.bf16.msra.mxu0 0
        %597 = vmatprep.subr.bf16.mxu0 0
        %598 = vmatpush1.bf16.msra.mxu0 0
        %599 = vmatprep.subr.bf16.mxu0 0
        %600 = vmatpush1.bf16.msra.mxu0 0
        %601 = vmatprep.subr.bf16.mxu0 0
        %602 = vmatpush1.bf16.msra.mxu0 0
        %603 = vmatprep.subr.bf16.mxu0 0
        %604 = vmatpush1.bf16.msra.mxu0 0
        %605 = vmatprep.subr.bf16.mxu0 0
        %606 = vmatpush1.bf16.msra.mxu0 0
        %607 = vmatprep.subr.bf16.mxu0 0
        %608 = vmatpush1.bf16.msra.mxu0 0
        %609 = vmatprep.subr.bf16.mxu0 0
        %610 = vmatpush1.bf16.msra.mxu0 0
        %611 = vmatprep.subr.bf16.mxu0 0
        %612 = vmatpush1.bf16.msra.mxu0 0
        %613 = vmatprep.subr.bf16.mxu0 0
        %614 = vmatpush1.bf16.msra.mxu0 0
        %615 = vmatprep.mubr.bf16.mxu0 0
        %616 = vmatmul.mubr.bf16.gmra.mrb[0].mxu0 %v574
        %v617 = vpop.f32.mrb[0].mxu0
        %v618 = vadd.f32 0.0, %v617
        %v619 = vpop.f32.mrb[0].mxu0
        %v620 = vpop.f32.mrb[0].mxu0
        %v621 = vadd.f32 0.0, %v620
        %v622 = vpop.f32.mrb[0].mxu0
        %623 = vmatprep.mubr.bf16.mxu0 0
        %624 = vmatmul.mubr.bf16.gmra.mrb[0].mxu0 %v577
        %v625 = vpop.f32.mrb[0].mxu0
        %v626 = vadd.f32 0.0, %v625
        %v627 = vpop.f32.mrb[0].mxu0
        %v628 = vpop.f32.mrb[0].mxu0
        %v629 = vadd.f32 0.0, %v628
        %v630 = vpop.f32.mrb[0].mxu0
        %631 = vdwg.mxu0
        %v632 = vld [vmem:[%s4] sm:$0x1]
        %v633 = vmul.f32 %v618, %v388
        %v634 = vmul.f32 %v621, %v391
        %v635 = vmul.f32 %v626, %v396
        %v636 = vmul.f32 %v629, %v399
        %v637 = vpack.c.bf16 %v634, %v633
        %v638 = vpack.c.bf16 %v636, %v635
        %vm639 = vcmask 261120
        %v641 = vsel %vm639, %v632, 0
        %643 = vmatprep.subr.bf16.mxu0 0
        %644 = vmatpush1.bf16.msra.mxu0 %v637
        %645 = vmatprep.subr.bf16.mxu0 0
        %646 = vmatpush1.bf16.msra.mxu0 %v638
        %647 = vmatprep.subr.bf16.mxu0 0
        %648 = vmatpush1.bf16.msra.mxu0 0
        %649 = vmatprep.subr.bf16.mxu0 0
        %650 = vmatpush1.bf16.msra.mxu0 0
        %651 = vmatprep.subr.bf16.mxu0 0
        %652 = vmatpush1.bf16.msra.mxu0 0
        %653 = vmatprep.subr.bf16.mxu0 0
        %654 = vmatpush1.bf16.msra.mxu0 0
        %655 = vmatprep.subr.bf16.mxu0 0
        %656 = vmatpush1.bf16.msra.mxu0 0
        %657 = vmatprep.subr.bf16.mxu0 0
        %658 = vmatpush1.bf16.msra.mxu0 0
        %659 = vmatprep.subr.bf16.mxu0 0
        %660 = vmatpush1.bf16.msra.mxu0 0
        %661 = vmatprep.subr.bf16.mxu0 0
        %662 = vmatpush1.bf16.msra.mxu0 0
        %663 = vmatprep.subr.bf16.mxu0 0
        %664 = vmatpush1.bf16.msra.mxu0 0
        %665 = vmatprep.subr.bf16.mxu0 0
        %666 = vmatpush1.bf16.msra.mxu0 0
        %667 = vmatprep.subr.bf16.mxu0 0
        %668 = vmatpush1.bf16.msra.mxu0 0
        %669 = vmatprep.subr.bf16.mxu0 0
        %670 = vmatpush1.bf16.msra.mxu0 0
        %671 = vmatprep.subr.bf16.mxu0 0
        %672 = vmatpush1.bf16.msra.mxu0 0
        %673 = vmatprep.subr.bf16.mxu0 0
        %674 = vmatpush1.bf16.msra.mxu0 0
        %675 = vmatprep.mubr.bf16.mxu0 0
        %676 = vmatmul.mubr.bf16.gmra.mrb[0].mxu0 %v641
        %v677 = vpop.f32.mrb[0].mxu0
        %v678 = vadd.f32 0.0, %v677
        %v679 = vpop.f32.mrb[0].mxu0
        %v680 = vpop.f32.mrb[0].mxu0
        %v681 = vpop.f32.mrb[0].mxu0
        %682 = vdwg.mxu0
        %v683 = vpack.c.bf16 %v678, %v678
        %v684 = vld [vmem:[%s5] sm:$0xf]
        %v685 = vld [vmem:[%s5 + $0x4] sm:$0xf]
        %v686 = vld [vmem:[%s5 + $0x8] sm:$0xf]
        %v687 = vld [vmem:[%s5 + $0xc] sm:$0xf]
        %v688 = vld [vmem:[%s5 + $0x10] sm:$0xf]
        %v689 = vld [vmem:[%s5 + $0x14] sm:$0xf]
        %v690 = vld [vmem:[%s5 + $0x18] sm:$0xf]
        %v691 = vld [vmem:[%s5 + $0x1c] sm:$0xf]
        %v692 = vld [vmem:[%s6] sm:$0x1]
        %v694 = vlaneseq
        %v695 = vshrl.u32 %v694, 7
        %v696 = vsub.s32 0, %v695
        %v697 = vrot.slane %v692, %v696
        %v707 = vunpack.c.l.b16 %v684
        %v708 = vunpack.c.l.b16 %v685
        %v709 = vunpack.c.l.b16 %v686
        %v710 = vunpack.c.l.b16 %v687
        %v711 = vunpack.c.l.b16 %v688
        %v712 = vunpack.c.l.b16 %v689
        %v713 = vunpack.c.l.b16 %v690
        %v714 = vunpack.c.l.b16 %v691
        %v715 = vpack.c.b16 %v708, %v707
        %v716 = vpack.c.b16 %v710, %v709
        %v717 = vpack.c.b16 %v712, %v711
        %v718 = vpack.c.b16 %v714, %v713
        %vm723 = vcmask 523264
        %v725 = vsel %vm723, %v683, 0
        %727 = vmatprep.subr.bf16.mxu0 0
        %728 = vmatpush1.bf16.msra.mxu0 %v715
        %729 = vmatprep.subr.bf16.mxu0 0
        %730 = vmatpush1.bf16.msra.mxu0 %v716
        %731 = vmatprep.subr.bf16.mxu0 0
        %732 = vmatpush1.bf16.msra.mxu0 %v717
        %733 = vmatprep.subr.bf16.mxu0 0
        %734 = vmatpush1.bf16.msra.mxu0 %v718
        %735 = vmatprep.subr.bf16.mxu0 0
        %736 = vmatpush1.bf16.msra.mxu0 0
        %737 = vmatprep.subr.bf16.mxu0 0
        %738 = vmatpush1.bf16.msra.mxu0 0
        %739 = vmatprep.subr.bf16.mxu0 0
        %740 = vmatpush1.bf16.msra.mxu0 0
        %741 = vmatprep.subr.bf16.mxu0 0
        %742 = vmatpush1.bf16.msra.mxu0 0
        %743 = vmatprep.subr.bf16.mxu0 0
        %744 = vmatpush1.bf16.msra.mxu0 0
        %745 = vmatprep.subr.bf16.mxu0 0
        %746 = vmatpush1.bf16.msra.mxu0 0
        %747 = vmatprep.subr.bf16.mxu0 0
        %748 = vmatpush1.bf16.msra.mxu0 0
        %749 = vmatprep.subr.bf16.mxu0 0
        %750 = vmatpush1.bf16.msra.mxu0 0
        %751 = vmatprep.subr.bf16.mxu0 0
        %752 = vmatpush1.bf16.msra.mxu0 0
        %753 = vmatprep.subr.bf16.mxu0 0
        %754 = vmatpush1.bf16.msra.mxu0 0
        %755 = vmatprep.subr.bf16.mxu0 0
        %756 = vmatpush1.bf16.msra.mxu0 0
        %757 = vmatprep.subr.bf16.mxu0 0
        %758 = vmatpush1.bf16.msra.mxu0 0
        %759 = vmatprep.mubr.bf16.mxu0 0
        %760 = vmatmul.mubr.bf16.gmra.mrb[0].mxu0 %v725
        %v761 = vpop.f32.mrb[0].mxu0
        %v762 = vadd.f32 %v697, %v761
        %v763 = vpop.f32.mrb[0].mxu0
        %v764 = vpop.f32.mrb[0].mxu0
        %v765 = vpop.f32.mrb[0].mxu0
        %766 = vdwg.mxu0
        %vm767 = vcmask 254976
        %768 = vst.msk [vmem:[%s274] sm:$0x3] %vm767, %v762
        %s769 = sand.u32 %s181, 1
        %s770 = scalar_lea.sflag [#allocation3], %s769
        %s771 = sand.u32 %s181, 1
        %s772 = smul.addr %s771, 2
        %s773 = scalar_lea.vmem [#allocation2], %s772
        // Predicated region
        $region49: #{tpu_custom_call.1} parent=47 // pred_check
          %p774 = pneg %p191
        $region50: #{tpu_custom_call.1} parent=47 // pred_check_branch
          %776 = sbr.rel (%p774) target = $region52
        $region51: #{tpu_custom_call.1} parent=47 // pred_region
          %s778 = ssub.s32 32, 32
          %779 = vsyncadd %s770, %s778
          %s780 = smul.addr %s21, 32
          %s781 = scalar_lea.hbm %s7, %s780
          %s783 = sshll.u32 %s773, 4
          %s784 = int_to_ptr.vmem [resolvable:$true] %s783
          %786 = dma.vmem_to_hbm [thread:$0]  %s784, 32, %s781, %s770
        $region52: #{tpu_custom_call.1} parent=47 // pred_fallthru
          _
      $region48: #{tpu_custom_call.1} parent=5 // pred_fallthru
        _
      %p787 = scmp.le.s32.totalorder 2, %s16
      // Predicated region
      $region53: #{tpu_custom_call.1} parent=5 // pred_check
        %p788 = pneg %p787
      $region54: #{tpu_custom_call.1} parent=5 // pred_check_branch
        %790 = sbr.rel (%p788) target = $region56
      $region55: #{tpu_custom_call.1} parent=5 // pred_region
        %s791 = ssub.s32 %s16, 2
        // Predicated region
        $region57: #{tpu_custom_call.1} parent=55 // pred_check
          %p792 = pneg %p197
        $region58: #{tpu_custom_call.1} parent=55 // pred_check_branch
          %794 = sbr.rel (%p792) target = $region60
        $region59: #{tpu_custom_call.1} parent=55 // pred_region
          %s795 = sand.u32 %s182, 1
          %s796 = scalar_lea.sflag [#allocation3], %s795
          %s797 = sand.u32 %s182, 1
          %s798 = smul.addr %s797, 2
          %s799 = scalar_lea.vmem [#allocation2], %s798
          %800 = dma.done %s796, 32
        $region60: #{tpu_custom_call.1} parent=55 // pred_fallthru
          _
      $region56: #{tpu_custom_call.1} parent=5 // pred_fallthru
        _
    $region6: #{tpu_custom_call.1} parent=1 // loop_footer
      %s20 = sadd.s32 1, %s16
    $region7: #{tpu_custom_call.1} parent=1 // loop_footer_branch
      %15 = sbr.rel target = $region3
    $region8: #{tpu_custom_call.1} parent=1 // loop_exit
      _
    %801 = vsyncpa [#allocation3], 1
    %s802 = scalar_lea.sflag [#allocation3], 1
    %803 = vsyncpa %s802, 1

</llo_original>
